<compile_context>
chip_gen: v7x
topology: tpu7x:2x2x1
jax: 0.10.0
libtpu: 0.0.40
codegen_flags: <defaults>
</compile_context>

<pallas_src>
import functools

import jax
import jax.numpy as jnp
from jax.experimental import pallas as pl
from jax.experimental.pallas import tpu as pltpu


def _round_up(x, m):
    return ((x + m - 1) // m) * m


# ----------------------------------------------------------------------------
# Fused kernel: feat_mapping+tanh (x2)  ->  AggAttention  ->  project2
# Output: one lane-dense slab  [ out | h_agg | beta0 | beta1 | zero-pad ]
# ----------------------------------------------------------------------------
def _fused_kernel(x0_ref, x1_ref,
                  fw0_ref, fb0_ref, fw1_ref, fb1_ref,
                  aw1_ref, ab1_ref, aw2_ref,
                  pw_ref, pb_ref,
                  slab_ref,
                  *, pad_width):
    # 1) feature mapping + tanh for both node types
    h0 = jnp.tanh(
        jnp.dot(x0_ref[...], fw0_ref[...], preferred_element_type=jnp.float32)
        + fb0_ref[...])
    h1 = jnp.tanh(
        jnp.dot(x1_ref[...], fw1_ref[...], preferred_element_type=jnp.float32)
        + fb1_ref[...])

    # 2) attention logits: tanh(h @ W1 + b1) . w2
    #    (VPU multiply + cross-lane reduce instead of a 1-column MXU matmul)
    aw1 = aw1_ref[...]
    ab1 = ab1_ref[...]
    w2_row = aw2_ref[...]                                   # (1, hh)
    s0 = jnp.tanh(jnp.dot(h0, aw1, preferred_element_type=jnp.float32) + ab1)
    s1 = jnp.tanh(jnp.dot(h1, aw1, preferred_element_type=jnp.float32) + ab1)
    l0 = jnp.sum(s0 * w2_row, axis=-1, keepdims=True)       # (TN, 1)
    l1 = jnp.sum(s1 * w2_row, axis=-1, keepdims=True)       # (TN, 1)

    # 3) softmax over the 2 views
    m = jnp.maximum(l0, l1)
    e0 = jnp.exp(l0 - m)
    e1 = jnp.exp(l1 - m)
    inv = pl.reciprocal(e0 + e1, approx=True)               # EUP slot
    b0 = e0 * inv
    b1 = e1 * inv

    # 4) weighted sum of views + project2
    hagg = b0 * h0 + b1 * h1
    out = (jnp.dot(hagg, pw_ref[...], preferred_element_type=jnp.float32)
           + pb_ref[...])

    # 5) pack everything into one lane-dense slab (full-width, unmasked store)
    pieces = [out, hagg, b0, b1]
    if pad_width > 0:
        pieces.append(jnp.zeros((out.shape[0], pad_width), jnp.float32))
    slab_ref[...] = jnp.concatenate(pieces, axis=1)


# ----------------------------------------------------------------------------
# Model wrapper
# ----------------------------------------------------------------------------
def model_forward(features, params, *, tile_n=256):
    x0, x1 = features
    n, m0 = x0.shape
    m1 = x1.shape[1]
    d = params["feat_w"][0].shape[1]
    hh = params["attn_w1"].shape[1]
    out_size = params["proj2_w"].shape[1]

    # Tail handling: pad rows to a multiple of tile_n (clamped for tiny N).
    tile_n = min(tile_n, _round_up(max(n, 8), 8))
    n_pad = _round_up(n, tile_n)
    if n_pad != n:
        x0 = jnp.pad(x0, ((0, n_pad - n), (0, 0)))
        x1 = jnp.pad(x1, ((0, n_pad - n), (0, 0)))

    slab_width = _round_up(out_size + d + 2, 128)
    pad_width = slab_width - (out_size + d + 2)

    kernel = functools.partial(_fused_kernel, pad_width=pad_width)
    grid = (n_pad // tile_n,)

    slab = pl.pallas_call(
        kernel,
        out_shape=jax.ShapeDtypeStruct((n_pad, slab_width), jnp.float32),
        grid_spec=pltpu.PrefetchScalarGridSpec(
            num_scalar_prefetch=0,
            grid=grid,
            in_specs=[
                pl.BlockSpec((tile_n, m0), lambda i: (i, 0)),      # features[0]
                pl.BlockSpec((tile_n, m1), lambda i: (i, 0)),      # features[1]
                pl.BlockSpec((m0, d), lambda i: (0, 0)),           # feat_w0
                pl.BlockSpec((1, d), lambda i: (0, 0)),            # feat_b0
                pl.BlockSpec((m1, d), lambda i: (0, 0)),           # feat_w1
                pl.BlockSpec((1, d), lambda i: (0, 0)),            # feat_b1
                pl.BlockSpec((d, hh), lambda i: (0, 0)),           # attn W1
                pl.BlockSpec((1, hh), lambda i: (0, 0)),           # attn b1
                pl.BlockSpec((1, hh), lambda i: (0, 0)),           # attn w2 (row)
                pl.BlockSpec((d, out_size), lambda i: (0, 0)),     # proj2 W
                pl.BlockSpec((1, out_size), lambda i: (0, 0)),     # proj2 b
            ],
            out_specs=pl.BlockSpec((tile_n, slab_width), lambda i: (i, 0)),
        ),
        compiler_params=pltpu.CompilerParams(
            dimension_semantics=("parallel",),
        ),
    )(
        x0, x1,
        params["feat_w"][0], params["feat_b"][0].reshape(1, d),
        params["feat_w"][1], params["feat_b"][1].reshape(1, d),
        params["attn_w1"], params["attn_b1"].reshape(1, hh),
        params["attn_w2"].reshape(1, hh),
        params["proj2_w"], params["proj2_b"].reshape(1, out_size),
    )

    out = slab[:n, :out_size]
    h_agg = slab[:n, out_size:out_size + d]
    beta = slab[:n, out_size + d:out_size + d + 2]
    return out, (h_agg, beta)


# ----------------------------------------------------------------------------
# Pure-JAX reference (sanity check)
# ----------------------------------------------------------------------------
def reference_forward(features, params):
    h = [
        jnp.tanh(features[i] @ params["feat_w"][i] + params["feat_b"][i])
        for i in range(len(features))
    ]
    H = jnp.stack([h[0], h[1]], axis=1)                        # (N, 2, D)
    s = jnp.tanh(H @ params["attn_w1"] + params["attn_b1"])    # (N, 2, Hh)
    w = jnp.squeeze(s @ params["attn_w2"].reshape(-1, 1), -1)  # (N, 2)
    beta = jax.nn.softmax(w, axis=1)
    h_agg = jnp.sum(beta[:, :, None] * H, axis=1)              # (N, D)
    out = h_agg @ params["proj2_w"] + params["proj2_b"]
    return out, (h_agg, beta)


if __name__ == "__main__":
    # Small, deterministic shapes.  N is deliberately NOT a multiple of the
    # tile so the padding / tail path is exercised, and big enough for >=2
    # parallel grid steps.
    N = 300                # number of target nodes
    input_dim = [12, 20]   # per-node-type raw feature dims
    hid_dim = 32
    out_size = 8
    attn_hidden = 128      # AggAttention default hidden_size

    key = jax.random.PRNGKey(0)
    keys = jax.random.split(key, 16)

    features = [
        jax.random.normal(keys[0], (N, input_dim[0]), dtype=jnp.float32),
        jax.random.normal(keys[1], (N, input_dim[1]), dtype=jnp.float32),
    ]

    params = {
        "feat_w": [
            0.1 * jax.random.normal(keys[2], (input_dim[0], hid_dim), jnp.float32),
            0.1 * jax.random.normal(keys[3], (input_dim[1], hid_dim), jnp.float32),
        ],
        "feat_b": [
            0.05 * jax.random.normal(keys[4], (hid_dim,), jnp.float32),
            0.05 * jax.random.normal(keys[5], (hid_dim,), jnp.float32),
        ],
        "attn_w1": 0.1 * jax.random.normal(keys[6], (hid_dim, attn_hidden), jnp.float32),
        "attn_b1": 0.05 * jax.random.normal(keys[7], (attn_hidden,), jnp.float32),
        "attn_w2": 0.1 * jax.random.normal(keys[8], (attn_hidden,), jnp.float32),
        "proj2_w": 0.1 * jax.random.normal(keys[9], (hid_dim, out_size), jnp.float32),
        "proj2_b": 0.05 * jax.random.normal(keys[10], (out_size,), jnp.float32),
    }

    out, (h_agg, beta) = model_forward(features, params)
    jax.block_until_ready((out, h_agg, beta))

    ref_out, (ref_hagg, ref_beta) = reference_forward(features, params)
    # Tolerance relaxed slightly vs. exact f32 because the softmax denominator
    # uses the approximate (EUP) reciprocal.
    assert jnp.allclose(out, ref_out, atol=2e-3, rtol=2e-3)
    assert jnp.allclose(h_agg, ref_hagg, atol=2e-3, rtol=2e-3)
    assert jnp.allclose(beta, ref_beta, atol=2e-3, rtol=2e-3)

    print("KERNEL_OK")
</pallas_src>

<mosaic_0001>
module attributes {stable_mosaic.version = 11 : i64} {
  func.func @_fused_kernel(%arg0: i32, %arg1: memref<256x12xf32, #tpu.memory_space<vmem>>, %arg2: memref<256x20xf32, #tpu.memory_space<vmem>>, %arg3: memref<12x32xf32, #tpu.memory_space<vmem>>, %arg4: memref<1x32xf32, #tpu.memory_space<vmem>>, %arg5: memref<20x32xf32, #tpu.memory_space<vmem>>, %arg6: memref<1x32xf32, #tpu.memory_space<vmem>>, %arg7: memref<32x128xf32, #tpu.memory_space<vmem>>, %arg8: memref<1x128xf32, #tpu.memory_space<vmem>>, %arg9: memref<1x128xf32, #tpu.memory_space<vmem>>, %arg10: memref<32x8xf32, #tpu.memory_space<vmem>>, %arg11: memref<1x8xf32, #tpu.memory_space<vmem>>, %arg12: memref<256x128xf32, #tpu.memory_space<vmem>>) attributes {dimension_semantics = [#tpu.dimension_semantics<parallel>], iteration_bounds = array<i64: 2>, scalar_prefetch = 0 : i64, scratch_operands = 0 : i64, tpu.core_type = #tpu.core_type<tc>, window_params = [{transform_indices = @transform_0, window_bounds = array<i64: 256, 12>}, {transform_indices = @transform_1, window_bounds = array<i64: 256, 20>}, {pipeline_mode = #tpu.pipeline_mode<synchronous>, transform_indices = @transform_2, window_bounds = array<i64: 12, 32>}, {pipeline_mode = #tpu.pipeline_mode<synchronous>, transform_indices = @transform_3, window_bounds = array<i64: 1, 32>}, {pipeline_mode = #tpu.pipeline_mode<synchronous>, transform_indices = @transform_4, window_bounds = array<i64: 20, 32>}, {pipeline_mode = #tpu.pipeline_mode<synchronous>, transform_indices = @transform_5, window_bounds = array<i64: 1, 32>}, {pipeline_mode = #tpu.pipeline_mode<synchronous>, transform_indices = @transform_6, window_bounds = array<i64: 32, 128>}, {pipeline_mode = #tpu.pipeline_mode<synchronous>, transform_indices = @transform_7, window_bounds = array<i64: 1, 128>}, {pipeline_mode = #tpu.pipeline_mode<synchronous>, transform_indices = @transform_8, window_bounds = array<i64: 1, 128>}, {pipeline_mode = #tpu.pipeline_mode<synchronous>, transform_indices = @transform_9, window_bounds = array<i64: 32, 8>}, {pipeline_mode = #tpu.pipeline_mode<synchronous>, transform_indices = @transform_10, window_bounds = array<i64: 1, 8>}, {transform_indices = @transform_11, window_bounds = array<i64: 256, 128>}]} {
    %c0 = arith.constant 0 : index
    %c0_0 = arith.constant 0 : index
    %0 = vector.load %arg1[%c0, %c0_0] : memref<256x12xf32, #tpu.memory_space<vmem>>, vector<256x12xf32>
    %c0_1 = arith.constant 0 : index
    %c0_2 = arith.constant 0 : index
    %1 = vector.load %arg3[%c0_1, %c0_2] : memref<12x32xf32, #tpu.memory_space<vmem>>, vector<12x32xf32>
    %cst = arith.constant dense<0.000000e+00> : vector<256x32xf32>
    %2 = tpu.matmul %0, %1, %cst {dimension_numbers = #tpu.dot_dimension_numbers<[1], [0], [0], [1], [0, 0, 1, 1], [], []>} : vector<256x12xf32>, vector<12x32xf32>, vector<256x32xf32> -> vector<256x32xf32>
    %c0_3 = arith.constant 0 : index
    %c0_4 = arith.constant 0 : index
    %3 = vector.load %arg4[%c0_3, %c0_4] : memref<1x32xf32, #tpu.memory_space<vmem>>, vector<1x32xf32>
    %4 = vector.broadcast %3 : vector<1x32xf32> to vector<256x32xf32>
    %5 = arith.addf %2, %4 : vector<256x32xf32>
    %6 = math.tanh %5 : vector<256x32xf32>
    %c0_5 = arith.constant 0 : index
    %c0_6 = arith.constant 0 : index
    %7 = vector.load %arg2[%c0_5, %c0_6] : memref<256x20xf32, #tpu.memory_space<vmem>>, vector<256x20xf32>
    %c0_7 = arith.constant 0 : index
    %c0_8 = arith.constant 0 : index
    %8 = vector.load %arg5[%c0_7, %c0_8] : memref<20x32xf32, #tpu.memory_space<vmem>>, vector<20x32xf32>
    %cst_9 = arith.constant dense<0.000000e+00> : vector<256x32xf32>
    %9 = tpu.matmul %7, %8, %cst_9 {dimension_numbers = #tpu.dot_dimension_numbers<[1], [0], [0], [1], [0, 0, 1, 1], [], []>} : vector<256x20xf32>, vector<20x32xf32>, vector<256x32xf32> -> vector<256x32xf32>
    %c0_10 = arith.constant 0 : index
    %c0_11 = arith.constant 0 : index
    %10 = vector.load %arg6[%c0_10, %c0_11] : memref<1x32xf32, #tpu.memory_space<vmem>>, vector<1x32xf32>
    %11 = vector.broadcast %10 : vector<1x32xf32> to vector<256x32xf32>
    %12 = arith.addf %9, %11 : vector<256x32xf32>
    %13 = math.tanh %12 : vector<256x32xf32>
    %c0_12 = arith.constant 0 : index
    %c0_13 = arith.constant 0 : index
    %14 = vector.load %arg7[%c0_12, %c0_13] : memref<32x128xf32, #tpu.memory_space<vmem>>, vector<32x128xf32>
    %c0_14 = arith.constant 0 : index
    %c0_15 = arith.constant 0 : index
    %15 = vector.load %arg8[%c0_14, %c0_15] : memref<1x128xf32, #tpu.memory_space<vmem>>, vector<1x128xf32>
    %c0_16 = arith.constant 0 : index
    %c0_17 = arith.constant 0 : index
    %16 = vector.load %arg9[%c0_16, %c0_17] : memref<1x128xf32, #tpu.memory_space<vmem>>, vector<1x128xf32>
    %cst_18 = arith.constant dense<0.000000e+00> : vector<256x128xf32>
    %17 = tpu.matmul %6, %14, %cst_18 {dimension_numbers = #tpu.dot_dimension_numbers<[1], [0], [0], [1], [0, 0, 1, 1], [], []>} : vector<256x32xf32>, vector<32x128xf32>, vector<256x128xf32> -> vector<256x128xf32>
    %18 = vector.broadcast %15 : vector<1x128xf32> to vector<256x128xf32>
    %19 = arith.addf %17, %18 : vector<256x128xf32>
    %20 = math.tanh %19 : vector<256x128xf32>
    %cst_19 = arith.constant dense<0.000000e+00> : vector<256x128xf32>
    %21 = tpu.matmul %13, %14, %cst_19 {dimension_numbers = #tpu.dot_dimension_numbers<[1], [0], [0], [1], [0, 0, 1, 1], [], []>} : vector<256x32xf32>, vector<32x128xf32>, vector<256x128xf32> -> vector<256x128xf32>
    %22 = vector.broadcast %15 : vector<1x128xf32> to vector<256x128xf32>
    %23 = arith.addf %21, %22 : vector<256x128xf32>
    %24 = math.tanh %23 : vector<256x128xf32>
    %25 = vector.broadcast %16 : vector<1x128xf32> to vector<256x128xf32>
    %26 = arith.mulf %20, %25 : vector<256x128xf32>
    %cst_20 = arith.constant dense<0.000000e+00> : vector<256xf32>
    %27 = vector.multi_reduction <add>, %26, %cst_20 [1] : vector<256x128xf32> to vector<256xf32>
    %28 = vector.shape_cast %27 : vector<256xf32> to vector<256x1xf32>
    %29 = vector.broadcast %16 : vector<1x128xf32> to vector<256x128xf32>
    %30 = arith.mulf %24, %29 : vector<256x128xf32>
    %cst_21 = arith.constant dense<0.000000e+00> : vector<256xf32>
    %31 = vector.multi_reduction <add>, %30, %cst_21 [1] : vector<256x128xf32> to vector<256xf32>
    %32 = vector.shape_cast %31 : vector<256xf32> to vector<256x1xf32>
    %33 = arith.maximumf %28, %32 : vector<256x1xf32>
    %34 = arith.subf %28, %33 : vector<256x1xf32>
    %35 = math.exp %34 : vector<256x1xf32>
    %36 = arith.subf %32, %33 : vector<256x1xf32>
    %37 = math.exp %36 : vector<256x1xf32>
    %38 = arith.addf %35, %37 : vector<256x1xf32>
    %39 = tpu.reciprocal %38 {approx = true} : vector<256x1xf32> -> vector<256x1xf32>
    %40 = arith.mulf %35, %39 : vector<256x1xf32>
    %41 = arith.mulf %37, %39 : vector<256x1xf32>
    %42 = vector.broadcast %40 : vector<256x1xf32> to vector<256x32xf32>
    %43 = arith.mulf %42, %6 : vector<256x32xf32>
    %44 = vector.broadcast %41 : vector<256x1xf32> to vector<256x32xf32>
    %45 = arith.mulf %44, %13 : vector<256x32xf32>
    %46 = arith.addf %43, %45 : vector<256x32xf32>
    %c0_22 = arith.constant 0 : index
    %c0_23 = arith.constant 0 : index
    %47 = vector.load %arg10[%c0_22, %c0_23] : memref<32x8xf32, #tpu.memory_space<vmem>>, vector<32x8xf32>
    %cst_24 = arith.constant dense<0.000000e+00> : vector<256x8xf32>
    %48 = tpu.matmul %46, %47, %cst_24 {dimension_numbers = #tpu.dot_dimension_numbers<[1], [0], [0], [1], [0, 0, 1, 1], [], []>} : vector<256x32xf32>, vector<32x8xf32>, vector<256x8xf32> -> vector<256x8xf32>
    %c0_25 = arith.constant 0 : index
    %c0_26 = arith.constant 0 : index
    %49 = vector.load %arg11[%c0_25, %c0_26] : memref<1x8xf32, #tpu.memory_space<vmem>>, vector<1x8xf32>
    %50 = vector.broadcast %49 : vector<1x8xf32> to vector<256x8xf32>
    %51 = arith.addf %48, %50 : vector<256x8xf32>
    %cst_27 = arith.constant 0.000000e+00 : f32
    %52 = vector.broadcast %cst_27 : f32 to vector<256x86xf32>
    %53 = tpu.concatenate %51, %46, %40, %41, %52 in 1 : vector<256x8xf32>, vector<256x32xf32>, vector<256x1xf32>, vector<256x1xf32>, vector<256x86xf32> -> vector<256x128xf32>
    %c0_28 = arith.constant 0 : index
    %c0_29 = arith.constant 0 : index
    %54 = vector.load %arg12[%c0_28, %c0_29] : memref<256x128xf32, #tpu.memory_space<vmem>>, vector<256x128xf32>
    tpu.vector_store %arg12[%c0_28, %c0_29], %53 {strides = array<i32>} : memref<256x128xf32, #tpu.memory_space<vmem>>, vector<256x128xf32>,
    return
  }
  func.func @transform_0(%arg0: i32) -> (i32, i32) {
    %c0_i32 = arith.constant 0 : i32
    %c0_i32_0 = arith.constant 0 : i32
    return %arg0, %c0_i32 : i32, i32
  }
  func.func @transform_1(%arg0: i32) -> (i32, i32) {
    %c0_i32 = arith.constant 0 : i32
    %c0_i32_0 = arith.constant 0 : i32
    return %arg0, %c0_i32 : i32, i32
  }
  func.func @transform_2(%arg0: i32) -> (i32, i32) {
    %c0_i32 = arith.constant 0 : i32
    %c0_i32_0 = arith.constant 0 : i32
    %c0_i32_1 = arith.constant 0 : i32
    return %c0_i32, %c0_i32_0 : i32, i32
  }
  func.func @transform_3(%arg0: i32) -> (i32, i32) {
    %c0_i32 = arith.constant 0 : i32
    %c0_i32_0 = arith.constant 0 : i32
    %c0_i32_1 = arith.constant 0 : i32
    return %c0_i32, %c0_i32_0 : i32, i32
  }
  func.func @transform_4(%arg0: i32) -> (i32, i32) {
    %c0_i32 = arith.constant 0 : i32
    %c0_i32_0 = arith.constant 0 : i32
    %c0_i32_1 = arith.constant 0 : i32
    return %c0_i32, %c0_i32_0 : i32, i32
  }
  func.func @transform_5(%arg0: i32) -> (i32, i32) {
    %c0_i32 = arith.constant 0 : i32
    %c0_i32_0 = arith.constant 0 : i32
    %c0_i32_1 = arith.constant 0 : i32
    return %c0_i32, %c0_i32_0 : i32, i32
  }
  func.func @transform_6(%arg0: i32) -> (i32, i32) {
    %c0_i32 = arith.constant 0 : i32
    %c0_i32_0 = arith.constant 0 : i32
    %c0_i32_1 = arith.constant 0 : i32
    return %c0_i32, %c0_i32_0 : i32, i32
  }
  func.func @transform_7(%arg0: i32) -> (i32, i32) {
    %c0_i32 = arith.constant 0 : i32
    %c0_i32_0 = arith.constant 0 : i32
    %c0_i32_1 = arith.constant 0 : i32
    return %c0_i32, %c0_i32_0 : i32, i32
  }
  func.func @transform_8(%arg0: i32) -> (i32, i32) {
    %c0_i32 = arith.constant 0 : i32
    %c0_i32_0 = arith.constant 0 : i32
    %c0_i32_1 = arith.constant 0 : i32
    return %c0_i32, %c0_i32_0 : i32, i32
  }
  func.func @transform_9(%arg0: i32) -> (i32, i32) {
    %c0_i32 = arith.constant 0 : i32
    %c0_i32_0 = arith.constant 0 : i32
    %c0_i32_1 = arith.constant 0 : i32
    return %c0_i32, %c0_i32_0 : i32, i32
  }
  func.func @transform_10(%arg0: i32) -> (i32, i32) {
    %c0_i32 = arith.constant 0 : i32
    %c0_i32_0 = arith.constant 0 : i32
    %c0_i32_1 = arith.constant 0 : i32
    return %c0_i32, %c0_i32_0 : i32, i32
  }
  func.func @transform_11(%arg0: i32) -> (i32, i32) {
    %c0_i32 = arith.constant 0 : i32
    %c0_i32_0 = arith.constant 0 : i32
    return %arg0, %c0_i32 : i32, i32
  }
}

</mosaic_0001>

<llo_original>
// kernel: tpu_custom_call.1
$region0: #{tpu_custom_call.1}
  #allocation0 [shape = 'u32[]', space=smem, size = 0x4, offset = 0x4, fixed_abs, tag = 'smem constant byte address 0x4 - core index']
  #allocation1 [shape = 'u32[144,128]{1,0:T(1,128)}', space=vmem, size = 0x12000, scoped, tag = 'internal scratch']
  %s0 = inlined_call_operand.vmem [shape: f32[512,12], index: 0, kind: input, shape index: {}]
  %s1 = inlined_call_operand.vmem [shape: f32[512,20], index: 1, kind: input, shape index: {}]
  %s2 = inlined_call_operand.vmem [shape: f32[12,32], index: 2, kind: input, shape index: {}]
  %s3 = inlined_call_operand.vmem [shape: f32[1,32], index: 3, kind: input, shape index: {}]
  %s4 = inlined_call_operand.vmem [shape: f32[20,32], index: 4, kind: input, shape index: {}]
  %s5 = inlined_call_operand.vmem [shape: f32[1,32], index: 5, kind: input, shape index: {}]
  %s6 = inlined_call_operand.vmem [shape: f32[32,128], index: 6, kind: input, shape index: {}]
  %s7 = inlined_call_operand.vmem [shape: f32[1,128], index: 7, kind: input, shape index: {}]
  %s8 = inlined_call_operand.vmem [shape: f32[1,128], index: 8, kind: input, shape index: {}]
  %s9 = inlined_call_operand.vmem [shape: f32[32,8], index: 9, kind: input, shape index: {}]
  %s10 = inlined_call_operand.vmem [shape: f32[1,8], index: 10, kind: input, shape index: {}]
  %s11 = inlined_call_operand.hbm [shape: f32[512,128], index: 11, kind: output, shape index: {}]
  %s12 = sld [smem:[#allocation0]]
  $region77: #{tpu_custom_call.1} parent=0
    _
  %s14 = ssub.s32 1, %s12
  %s15 = scalar_select 0, %s14, %s12
  $region1: #{tpu_custom_call.1} parent=0
    #allocation2 [shape = 'u8[262144]{0}', space=vmem, size = 0x40000, scoped, tag = 'output window, operand 0']
    #allocation3 [shape = 's32[2]{0}', space=sflag, size = 0x8, scoped, tag = 'scoped memory for tpu_custom_call.1']
    %16 = vsyncpa [#allocation3], 0
    %s17 = scalar_lea.sflag [#allocation3], 1
    %18 = vsyncpa %s17, 0
    loop: start=0, step=1, limit=4
    $region2: #{tpu_custom_call.1} parent=1 // loop_pre_header
      _
    $region3: #{tpu_custom_call.1} parent=1 // loop_header
      %s20 = sphi 0, %s24
      %p21 = scmp.ge.s32.totalorder %s20, 4
      %s30 = sphi 0, %s32
      %s33 = sphi 0, %s30
      %s34 = sphi 0, %s33
      %s50 = sphi 0, %s34
      %s56 = sphi 0, %s58
      %s59 = sphi 0, %s56
      %s60 = sphi 0, %s59
      %s76 = sphi 0, %s60
      %s80 = sphi 0, %s80
      %s82 = sphi 0, %s80
      %s83 = sphi 0, %s82
      %s97 = sphi 0, %s83
      %s101 = sphi 0, %s101
      %s103 = sphi 0, %s101
      %s104 = sphi 0, %s103
      %s118 = sphi 0, %s104
      %s122 = sphi 0, %s122
      %s124 = sphi 0, %s122
      %s125 = sphi 0, %s124
      %s139 = sphi 0, %s125
      %s143 = sphi 0, %s143
      %s145 = sphi 0, %s143
      %s146 = sphi 0, %s145
      %s160 = sphi 0, %s146
      %s164 = sphi 0, %s164
      %s166 = sphi 0, %s164
      %s167 = sphi 0, %s166
      %s181 = sphi 0, %s167
      %s185 = sphi 0, %s185
      %s187 = sphi 0, %s185
      %s188 = sphi 0, %s187
      %s202 = sphi 0, %s188
      %s206 = sphi 0, %s206
      %s208 = sphi 0, %s206
      %s209 = sphi 0, %s208
      %s223 = sphi 0, %s209
      %s227 = sphi 0, %s227
      %s229 = sphi 0, %s227
      %s230 = sphi 0, %s229
      %s244 = sphi 0, %s230
      %s248 = sphi 0, %s248
      %s250 = sphi 0, %s248
      %s251 = sphi 0, %s250
      %s265 = sphi 0, %s251
      %s271 = sphi 0, %s273
      %s274 = sphi 0, %s271
      %s275 = sphi 0, %s274
      %s291 = sphi 0, %s275
    $region4: #{tpu_custom_call.1} parent=1 // loop_header_branch
      %23 = sbr.rel (%p21) target = $region8
    $region5: #{tpu_custom_call.1} parent=1 // loop_body
      %s25 = ssub.s32 %s20, 1
      %s26 = ssub.s32 %s20, 2
      %s27 = sadd.s32 %s20, 1
      %s28 = ssub.s32 %s20, %s27
      %p29 = scmp.eq.s32.totalorder %s28, 0
      %s31 = sadd.s32 %s30, 1
      %s32 = scalar_select %p29, %s30, %s31
      %p35 = pneg %p29
      %p36 = scmp.eq.s32.totalorder %s20, 1
      %p37 = por %p35, %p36
      %p38 = scmp.ne.s32.totalorder %s30, %s33
      %p39 = scmp.eq.s32.totalorder %s20, 0
      %p40 = por %p38, %p39
      %p41 = scmp.ne.s32.totalorder %s30, %s33
      %p42 = scmp.eq.s32.totalorder %s25, 1
      %p43 = por %p41, %p42
      %p44 = scmp.ne.s32.totalorder %s33, %s34
      %p45 = scmp.eq.s32.totalorder %s25, 0
      %p46 = por %p44, %p45
      %p47 = scmp.ne.s32.totalorder %s33, %s34
      %p48 = scmp.eq.s32.totalorder %s26, 1
      %p49 = por %p47, %p48
      %p51 = scmp.ne.s32.totalorder %s34, %s50
      %p52 = scmp.eq.s32.totalorder %s26, 0
      %p53 = por %p51, %p52
      %s54 = ssub.s32 %s20, %s27
      %p55 = scmp.eq.s32.totalorder %s54, 0
      %s57 = sadd.s32 %s56, 1
      %s58 = scalar_select %p55, %s56, %s57
      %p61 = pneg %p55
      %p62 = scmp.eq.s32.totalorder %s20, 1
      %p63 = por %p61, %p62
      %p64 = scmp.ne.s32.totalorder %s56, %s59
      %p65 = scmp.eq.s32.totalorder %s20, 0
      %p66 = por %p64, %p65
      %p67 = scmp.ne.s32.totalorder %s56, %s59
      %p68 = scmp.eq.s32.totalorder %s25, 1
      %p69 = por %p67, %p68
      %p70 = scmp.ne.s32.totalorder %s59, %s60
      %p71 = scmp.eq.s32.totalorder %s25, 0
      %p72 = por %p70, %p71
      %p73 = scmp.ne.s32.totalorder %s59, %s60
      %p74 = scmp.eq.s32.totalorder %s26, 1
      %p75 = por %p73, %p74
      %p77 = scmp.ne.s32.totalorder %s60, %s76
      %p78 = scmp.eq.s32.totalorder %s26, 0
      %p79 = por %p77, %p78
      %s81 = sadd.s32 %s80, 1
      %p84 = scmp.eq.s32.totalorder %s20, 1
      %p85 = scmp.ne.s32.totalorder %s80, %s82
      %p86 = scmp.eq.s32.totalorder %s20, 0
      %p87 = por %p85, %p86
      %p88 = scmp.ne.s32.totalorder %s80, %s82
      %p89 = scmp.eq.s32.totalorder %s25, 1
      %p90 = por %p88, %p89
      %p91 = scmp.ne.s32.totalorder %s82, %s83
      %p92 = scmp.eq.s32.totalorder %s25, 0
      %p93 = por %p91, %p92
      %p94 = scmp.ne.s32.totalorder %s82, %s83
      %p95 = scmp.eq.s32.totalorder %s26, 1
      %p96 = por %p94, %p95
      %p98 = scmp.ne.s32.totalorder %s83, %s97
      %p99 = scmp.eq.s32.totalorder %s26, 0
      %p100 = por %p98, %p99
      %s102 = sadd.s32 %s101, 1
      %p105 = scmp.eq.s32.totalorder %s20, 1
      %p106 = scmp.ne.s32.totalorder %s101, %s103
      %p107 = scmp.eq.s32.totalorder %s20, 0
      %p108 = por %p106, %p107
      %p109 = scmp.ne.s32.totalorder %s101, %s103
      %p110 = scmp.eq.s32.totalorder %s25, 1
      %p111 = por %p109, %p110
      %p112 = scmp.ne.s32.totalorder %s103, %s104
      %p113 = scmp.eq.s32.totalorder %s25, 0
      %p114 = por %p112, %p113
      %p115 = scmp.ne.s32.totalorder %s103, %s104
      %p116 = scmp.eq.s32.totalorder %s26, 1
      %p117 = por %p115, %p116
      %p119 = scmp.ne.s32.totalorder %s104, %s118
      %p120 = scmp.eq.s32.totalorder %s26, 0
      %p121 = por %p119, %p120
      %s123 = sadd.s32 %s122, 1
      %p126 = scmp.eq.s32.totalorder %s20, 1
      %p127 = scmp.ne.s32.totalorder %s122, %s124
      %p128 = scmp.eq.s32.totalorder %s20, 0
      %p129 = por %p127, %p128
      %p130 = scmp.ne.s32.totalorder %s122, %s124
      %p131 = scmp.eq.s32.totalorder %s25, 1
      %p132 = por %p130, %p131
      %p133 = scmp.ne.s32.totalorder %s124, %s125
      %p134 = scmp.eq.s32.totalorder %s25, 0
      %p135 = por %p133, %p134
      %p136 = scmp.ne.s32.totalorder %s124, %s125
      %p137 = scmp.eq.s32.totalorder %s26, 1
      %p138 = por %p136, %p137
      %p140 = scmp.ne.s32.totalorder %s125, %s139
      %p141 = scmp.eq.s32.totalorder %s26, 0
      %p142 = por %p140, %p141
      %s144 = sadd.s32 %s143, 1
      %p147 = scmp.eq.s32.totalorder %s20, 1
      %p148 = scmp.ne.s32.totalorder %s143, %s145
      %p149 = scmp.eq.s32.totalorder %s20, 0
      %p150 = por %p148, %p149
      %p151 = scmp.ne.s32.totalorder %s143, %s145
      %p152 = scmp.eq.s32.totalorder %s25, 1
      %p153 = por %p151, %p152
      %p154 = scmp.ne.s32.totalorder %s145, %s146
      %p155 = scmp.eq.s32.totalorder %s25, 0
      %p156 = por %p154, %p155
      %p157 = scmp.ne.s32.totalorder %s145, %s146
      %p158 = scmp.eq.s32.totalorder %s26, 1
      %p159 = por %p157, %p158
      %p161 = scmp.ne.s32.totalorder %s146, %s160
      %p162 = scmp.eq.s32.totalorder %s26, 0
      %p163 = por %p161, %p162
      %s165 = sadd.s32 %s164, 1
      %p168 = scmp.eq.s32.totalorder %s20, 1
      %p169 = scmp.ne.s32.totalorder %s164, %s166
      %p170 = scmp.eq.s32.totalorder %s20, 0
      %p171 = por %p169, %p170
      %p172 = scmp.ne.s32.totalorder %s164, %s166
      %p173 = scmp.eq.s32.totalorder %s25, 1
      %p174 = por %p172, %p173
      %p175 = scmp.ne.s32.totalorder %s166, %s167
      %p176 = scmp.eq.s32.totalorder %s25, 0
      %p177 = por %p175, %p176
      %p178 = scmp.ne.s32.totalorder %s166, %s167
      %p179 = scmp.eq.s32.totalorder %s26, 1
      %p180 = por %p178, %p179
      %p182 = scmp.ne.s32.totalorder %s167, %s181
      %p183 = scmp.eq.s32.totalorder %s26, 0
      %p184 = por %p182, %p183
      %s186 = sadd.s32 %s185, 1
      %p189 = scmp.eq.s32.totalorder %s20, 1
      %p190 = scmp.ne.s32.totalorder %s185, %s187
      %p191 = scmp.eq.s32.totalorder %s20, 0
      %p192 = por %p190, %p191
      %p193 = scmp.ne.s32.totalorder %s185, %s187
      %p194 = scmp.eq.s32.totalorder %s25, 1
      %p195 = por %p193, %p194
      %p196 = scmp.ne.s32.totalorder %s187, %s188
      %p197 = scmp.eq.s32.totalorder %s25, 0
      %p198 = por %p196, %p197
      %p199 = scmp.ne.s32.totalorder %s187, %s188
      %p200 = scmp.eq.s32.totalorder %s26, 1
      %p201 = por %p199, %p200
      %p203 = scmp.ne.s32.totalorder %s188, %s202
      %p204 = scmp.eq.s32.totalorder %s26, 0
      %p205 = por %p203, %p204
      %s207 = sadd.s32 %s206, 1
      %p210 = scmp.eq.s32.totalorder %s20, 1
      %p211 = scmp.ne.s32.totalorder %s206, %s208
      %p212 = scmp.eq.s32.totalorder %s20, 0
      %p213 = por %p211, %p212
      %p214 = scmp.ne.s32.totalorder %s206, %s208
      %p215 = scmp.eq.s32.totalorder %s25, 1
      %p216 = por %p214, %p215
      %p217 = scmp.ne.s32.totalorder %s208, %s209
      %p218 = scmp.eq.s32.totalorder %s25, 0
      %p219 = por %p217, %p218
      %p220 = scmp.ne.s32.totalorder %s208, %s209
      %p221 = scmp.eq.s32.totalorder %s26, 1
      %p222 = por %p220, %p221
      %p224 = scmp.ne.s32.totalorder %s209, %s223
      %p225 = scmp.eq.s32.totalorder %s26, 0
      %p226 = por %p224, %p225
      %s228 = sadd.s32 %s227, 1
      %p231 = scmp.eq.s32.totalorder %s20, 1
      %p232 = scmp.ne.s32.totalorder %s227, %s229
      %p233 = scmp.eq.s32.totalorder %s20, 0
      %p234 = por %p232, %p233
      %p235 = scmp.ne.s32.totalorder %s227, %s229
      %p236 = scmp.eq.s32.totalorder %s25, 1
      %p237 = por %p235, %p236
      %p238 = scmp.ne.s32.totalorder %s229, %s230
      %p239 = scmp.eq.s32.totalorder %s25, 0
      %p240 = por %p238, %p239
      %p241 = scmp.ne.s32.totalorder %s229, %s230
      %p242 = scmp.eq.s32.totalorder %s26, 1
      %p243 = por %p241, %p242
      %p245 = scmp.ne.s32.totalorder %s230, %s244
      %p246 = scmp.eq.s32.totalorder %s26, 0
      %p247 = por %p245, %p246
      %s249 = sadd.s32 %s248, 1
      %p252 = scmp.eq.s32.totalorder %s20, 1
      %p253 = scmp.ne.s32.totalorder %s248, %s250
      %p254 = scmp.eq.s32.totalorder %s20, 0
      %p255 = por %p253, %p254
      %p256 = scmp.ne.s32.totalorder %s248, %s250
      %p257 = scmp.eq.s32.totalorder %s25, 1
      %p258 = por %p256, %p257
      %p259 = scmp.ne.s32.totalorder %s250, %s251
      %p260 = scmp.eq.s32.totalorder %s25, 0
      %p261 = por %p259, %p260
      %p262 = scmp.ne.s32.totalorder %s250, %s251
      %p263 = scmp.eq.s32.totalorder %s26, 1
      %p264 = por %p262, %p263
      %p266 = scmp.ne.s32.totalorder %s251, %s265
      %p267 = scmp.eq.s32.totalorder %s26, 0
      %p268 = por %p266, %p267
      %s269 = ssub.s32 %s20, %s27
      %p270 = scmp.eq.s32.totalorder %s269, 0
      %s272 = sadd.s32 %s271, 1
      %s273 = scalar_select %p270, %s271, %s272
      %p276 = pneg %p270
      %p277 = scmp.eq.s32.totalorder %s20, 1
      %p278 = por %p276, %p277
      %p279 = scmp.ne.s32.totalorder %s271, %s274
      %p280 = scmp.eq.s32.totalorder %s20, 0
      %p281 = por %p279, %p280
      %p282 = scmp.ne.s32.totalorder %s271, %s274
      %p283 = scmp.eq.s32.totalorder %s25, 1
      %p284 = por %p282, %p283
      %p285 = scmp.ne.s32.totalorder %s274, %s275
      %p286 = scmp.eq.s32.totalorder %s25, 0
      %p287 = por %p285, %p286
      %p288 = scmp.ne.s32.totalorder %s274, %s275
      %p289 = scmp.eq.s32.totalorder %s26, 1
      %p290 = por %p288, %p289
      %p292 = scmp.ne.s32.totalorder %s275, %s291
      %p293 = scmp.eq.s32.totalorder %s26, 0
      %p294 = por %p292, %p293
      %p295 = scmp.le.s32.totalorder 1, %s20
      %p296 = scmp.lt.s32.totalorder %s20, 3
      %p297 = pnand %p295, %p296
      %p298 = pneg %p297
      // Predicated region
      $region9: #{tpu_custom_call.1} parent=5 // pred_check
        _
      $region10: #{tpu_custom_call.1} parent=5 // pred_check_branch
        %300 = sbr.rel (%p297) target = $region12
      $region11: #{tpu_custom_call.1} parent=5 // pred_region
        %s301 = ssub.s32 %s20, 1
        // Predicated region
        $region13: #{tpu_custom_call.1} parent=11 // pred_check
          %p302 = pneg %p93
        $region14: #{tpu_custom_call.1} parent=11 // pred_check_branch
          %304 = sbr.rel (%p302) target = $region16
        $region15: #{tpu_custom_call.1} parent=11 // pred_region
          _
        $region16: #{tpu_custom_call.1} parent=11 // pred_fallthru
          _
        // Predicated region
        $region17: #{tpu_custom_call.1} parent=11 // pred_check
          %p305 = pneg %p114
        $region18: #{tpu_custom_call.1} parent=11 // pred_check_branch
          %307 = sbr.rel (%p305) target = $region20
        $region19: #{tpu_custom_call.1} parent=11 // pred_region
          _
        $region20: #{tpu_custom_call.1} parent=11 // pred_fallthru
          _
        // Predicated region
        $region21: #{tpu_custom_call.1} parent=11 // pred_check
          %p308 = pneg %p135
        $region22: #{tpu_custom_call.1} parent=11 // pred_check_branch
          %310 = sbr.rel (%p308) target = $region24
        $region23: #{tpu_custom_call.1} parent=11 // pred_region
          _
        $region24: #{tpu_custom_call.1} parent=11 // pred_fallthru
          _
        // Predicated region
        $region25: #{tpu_custom_call.1} parent=11 // pred_check
          %p311 = pneg %p156
        $region26: #{tpu_custom_call.1} parent=11 // pred_check_branch
          %313 = sbr.rel (%p311) target = $region28
        $region27: #{tpu_custom_call.1} parent=11 // pred_region
          _
        $region28: #{tpu_custom_call.1} parent=11 // pred_fallthru
          _
        // Predicated region
        $region29: #{tpu_custom_call.1} parent=11 // pred_check
          %p314 = pneg %p177
        $region30: #{tpu_custom_call.1} parent=11 // pred_check_branch
          %316 = sbr.rel (%p314) target = $region32
        $region31: #{tpu_custom_call.1} parent=11 // pred_region
          _
        $region32: #{tpu_custom_call.1} parent=11 // pred_fallthru
          _
        // Predicated region
        $region33: #{tpu_custom_call.1} parent=11 // pred_check
          %p317 = pneg %p198
        $region34: #{tpu_custom_call.1} parent=11 // pred_check_branch
          %319 = sbr.rel (%p317) target = $region36
        $region35: #{tpu_custom_call.1} parent=11 // pred_region
          _
        $region36: #{tpu_custom_call.1} parent=11 // pred_fallthru
          _
        // Predicated region
        $region37: #{tpu_custom_call.1} parent=11 // pred_check
          %p320 = pneg %p219
        $region38: #{tpu_custom_call.1} parent=11 // pred_check_branch
          %322 = sbr.rel (%p320) target = $region40
        $region39: #{tpu_custom_call.1} parent=11 // pred_region
          _
        $region40: #{tpu_custom_call.1} parent=11 // pred_fallthru
          _
        // Predicated region
        $region41: #{tpu_custom_call.1} parent=11 // pred_check
          %p323 = pneg %p240
        $region42: #{tpu_custom_call.1} parent=11 // pred_check_branch
          %325 = sbr.rel (%p323) target = $region44
        $region43: #{tpu_custom_call.1} parent=11 // pred_region
          _
        $region44: #{tpu_custom_call.1} parent=11 // pred_fallthru
          _
        // Predicated region
        $region45: #{tpu_custom_call.1} parent=11 // pred_check
          %p326 = pneg %p261
        $region46: #{tpu_custom_call.1} parent=11 // pred_check_branch
          %328 = sbr.rel (%p326) target = $region48
        $region47: #{tpu_custom_call.1} parent=11 // pred_region
          _
        $region48: #{tpu_custom_call.1} parent=11 // pred_fallthru
          _
      $region12: #{tpu_custom_call.1} parent=5 // pred_fallthru
        _
      %p329 = scmp.lt.s32.totalorder %s20, 2
      // Predicated region
      $region49: #{tpu_custom_call.1} parent=5 // pred_check
        %p330 = pneg %p329
      $region50: #{tpu_custom_call.1} parent=5 // pred_check_branch
        %332 = sbr.rel (%p330) target = $region52
      $region51: #{tpu_custom_call.1} parent=5 // pred_region
        // Predicated region
        $region53: #{tpu_custom_call.1} parent=51 // pred_check
          %p333 = pneg %p40
        $region54: #{tpu_custom_call.1} parent=51 // pred_check_branch
          %335 = sbr.rel (%p333) target = $region56
        $region55: #{tpu_custom_call.1} parent=51 // pred_region
          %s336 = smul.u32 32, %s20
          %p337 = scmp.lt.s32.totalorder %s336, 63
          %s338 = scalar_select %p337, %s336, 63
          %s339 = smul.addr %s338, 8
          %s340 = scalar_lea.vmem %s0, %s339
          %s341 = smul.u32 32, %s20
        $region56: #{tpu_custom_call.1} parent=51 // pred_fallthru
          _
        // Predicated region
        $region57: #{tpu_custom_call.1} parent=51 // pred_check
          %p342 = pneg %p66
        $region58: #{tpu_custom_call.1} parent=51 // pred_check_branch
          %344 = sbr.rel (%p342) target = $region60
        $region59: #{tpu_custom_call.1} parent=51 // pred_region
          %s345 = smul.u32 32, %s20
          %p346 = scmp.lt.s32.totalorder %s345, 63
          %s347 = scalar_select %p346, %s345, 63
          %s348 = smul.addr %s347, 8
          %s349 = scalar_lea.vmem %s1, %s348
          %s350 = smul.u32 32, %s20
        $region60: #{tpu_custom_call.1} parent=51 // pred_fallthru
          _
      $region52: #{tpu_custom_call.1} parent=5 // pred_fallthru
        _
      %p351 = scmp.le.s32.totalorder 1, %s20
      %p352 = scmp.lt.s32.totalorder %s20, 3
      %p353 = pnand %p351, %p352
      %p354 = pneg %p353
      // Predicated region
      $region61: #{tpu_custom_call.1} parent=5 // pred_check
        _
      $region62: #{tpu_custom_call.1} parent=5 // pred_check_branch
        %356 = sbr.rel (%p353) target = $region64
      $region63: #{tpu_custom_call.1} parent=5 // pred_region
        %s357 = ssub.s32 %s20, 1
        %s358 = smul.u32 32, %s25
        %p359 = scmp.lt.s32.totalorder %s358, 63
        %s360 = scalar_select %p359, %s358, 63
        %s361 = smul.addr %s360, 8
        %s362 = scalar_lea.vmem %s0, %s361
        %p363 = pneg %p46
        %p364 = pneg %p43
        %s365 = smul.u32 32, %s25
        %p366 = scmp.lt.s32.totalorder %s365, 63
        %s367 = scalar_select %p366, %s365, 63
        %s368 = smul.addr %s367, 8
        %s369 = scalar_lea.vmem %s1, %s368
        %p370 = pneg %p72
        %p371 = pneg %p69
        %p372 = pneg %p93
        %p373 = pneg %p90
        %p374 = pneg %p114
        %p375 = pneg %p111
        %p376 = pneg %p135
        %p377 = pneg %p132
        %p378 = pneg %p156
        %p379 = pneg %p153
        %p380 = pneg %p177
        %p381 = pneg %p174
        %p382 = pneg %p198
        %p383 = pneg %p195
        %p384 = pneg %p219
        %p385 = pneg %p216
        %p386 = pneg %p240
        %p387 = pneg %p237
        %p388 = pneg %p261
        %p389 = pneg %p258
        %p390 = pneg %p287
        %p391 = pneg %p284
        %s392 = sand.u32 %s274, 1
        %s393 = scalar_lea.sflag [#allocation3], %s392
        %s394 = sand.u32 %s274, 1
        %s395 = smul.addr %s394, 256
        %s396 = scalar_lea.vmem [#allocation2], %s395
        %s397 = smul.u32 32, %s25
        %p398 = scmp.lt.s32.totalorder %s397, 63
        %s399 = scalar_select %p398, %s397, 63
        %s400 = smul.addr %s399, 8
        %s401 = scalar_lea.vmem %s0, %s400
        %s402 = smul.u32 32, %s25
        %s403 = smul.u32 32, %s25
        %p404 = scmp.lt.s32.totalorder %s403, 63
        %s405 = scalar_select %p404, %s403, 63
        %s406 = smul.addr %s405, 8
        %s407 = scalar_lea.vmem %s1, %s406
        %s408 = smul.u32 32, %s25
        %s409 = smul.u32 32, %s25
        %v410 = vld [vmem:[%s401] sm:$0xff]
        %v411 = vld [vmem:[%s401 + $0x8] sm:$0xff]
        %v412 = vld [vmem:[%s401 + $0x10] sm:$0xff]
        %v413 = vld [vmem:[%s401 + $0x18] sm:$0xff]
        %v414 = vld [vmem:[%s401 + $0x20] sm:$0xff]
        %v415 = vld [vmem:[%s401 + $0x28] sm:$0xff]
        %v416 = vld [vmem:[%s401 + $0x30] sm:$0xff]
        %v417 = vld [vmem:[%s401 + $0x38] sm:$0xff]
        %v418 = vld [vmem:[%s401 + $0x40] sm:$0xff]
        %v419 = vld [vmem:[%s401 + $0x48] sm:$0xff]
        %v420 = vld [vmem:[%s401 + $0x50] sm:$0xff]
        %v421 = vld [vmem:[%s401 + $0x58] sm:$0xff]
        %v422 = vld [vmem:[%s401 + $0x60] sm:$0xff]
        %v423 = vld [vmem:[%s401 + $0x68] sm:$0xff]
        %v424 = vld [vmem:[%s401 + $0x70] sm:$0xff]
        %v425 = vld [vmem:[%s401 + $0x78] sm:$0xff]
        %v426 = vld [vmem:[%s401 + $0x80] sm:$0xff]
        %v427 = vld [vmem:[%s401 + $0x88] sm:$0xff]
        %v428 = vld [vmem:[%s401 + $0x90] sm:$0xff]
        %v429 = vld [vmem:[%s401 + $0x98] sm:$0xff]
        %v430 = vld [vmem:[%s401 + $0xa0] sm:$0xff]
        %v431 = vld [vmem:[%s401 + $0xa8] sm:$0xff]
        %v432 = vld [vmem:[%s401 + $0xb0] sm:$0xff]
        %v433 = vld [vmem:[%s401 + $0xb8] sm:$0xff]
        %v434 = vld [vmem:[%s401 + $0xc0] sm:$0xff]
        %v435 = vld [vmem:[%s401 + $0xc8] sm:$0xff]
        %v436 = vld [vmem:[%s401 + $0xd0] sm:$0xff]
        %v437 = vld [vmem:[%s401 + $0xd8] sm:$0xff]
        %v438 = vld [vmem:[%s401 + $0xe0] sm:$0xff]
        %v439 = vld [vmem:[%s401 + $0xe8] sm:$0xff]
        %v440 = vld [vmem:[%s401 + $0xf0] sm:$0xff]
        %v441 = vld [vmem:[%s401 + $0xf8] sm:$0xff]
        %v442 = vld [vmem:[%s2] sm:$0xff]
        %v443 = vld [vmem:[%s2 + $0x8] sm:$0xf]
        %v444 = vld [vmem:[%s3] sm:$0x1]
        %v446 = vlaneseq
        %v447 = vshrl.u32 %v446, 7
        %v448 = vsub.s32 0, %v447
        %v449 = vrot.slane %v444, %v448
        %vm451 = vcmask 97280
        %v453 = vsel %vm451, %v410, 0
        %v456 = vsel %vm451, %v411, 0
        %v459 = vsel %vm451, %v412, 0
        %v462 = vsel %vm451, %v413, 0
        %v465 = vsel %vm451, %v414, 0
        %v468 = vsel %vm451, %v415, 0
        %v471 = vsel %vm451, %v416, 0
        %v474 = vsel %vm451, %v417, 0
        %v477 = vsel %vm451, %v418, 0
        %v480 = vsel %vm451, %v419, 0
        %v483 = vsel %vm451, %v420, 0
        %v486 = vsel %vm451, %v421, 0
        %v489 = vsel %vm451, %v422, 0
        %v492 = vsel %vm451, %v423, 0
        %v495 = vsel %vm451, %v424, 0
        %v498 = vsel %vm451, %v425, 0
        %v501 = vsel %vm451, %v426, 0
        %v504 = vsel %vm451, %v427, 0
        %v507 = vsel %vm451, %v428, 0
        %v510 = vsel %vm451, %v429, 0
        %v513 = vsel %vm451, %v430, 0
        %v516 = vsel %vm451, %v431, 0
        %v519 = vsel %vm451, %v432, 0
        %v522 = vsel %vm451, %v433, 0
        %v525 = vsel %vm451, %v434, 0
        %v528 = vsel %vm451, %v435, 0
        %v531 = vsel %vm451, %v436, 0
        %v534 = vsel %vm451, %v437, 0
        %v537 = vsel %vm451, %v438, 0
        %v540 = vsel %vm451, %v439, 0
        %v543 = vsel %vm451, %v440, 0
        %v546 = vsel %vm451, %v441, 0
        %vm548 = vcmask 1043456
        %v550 = vsel %vm548, %v443, 0
        %552 = vmatprep.subr.mxu0 0.0
        %553 = vmatpush1.msra.mxu0 %v442
        %554 = vmatprep.subr.mxu0 0.0
        %555 = vmatpush1.msra.mxu0 %v550
        %556 = vmatprep.subr.mxu0 0.0
        %557 = vmatpush1.msra.mxu0 0.0
        %558 = vmatprep.subr.mxu0 0.0
        %559 = vmatpush1.msra.mxu0 0.0
        %560 = vmatprep.subr.mxu0 0.0
        %561 = vmatpush1.msra.mxu0 0.0
        %562 = vmatprep.subr.mxu0 0.0
        %563 = vmatpush1.msra.mxu0 0.0
        %564 = vmatprep.subr.mxu0 0.0
        %565 = vmatpush1.msra.mxu0 0.0
        %566 = vmatprep.subr.mxu0 0.0
        %567 = vmatpush1.msra.mxu0 0.0
        %568 = vmatprep.subr.mxu0 0.0
        %569 = vmatpush1.msra.mxu0 0.0
        %570 = vmatprep.subr.mxu0 0.0
        %571 = vmatpush1.msra.mxu0 0.0
        %572 = vmatprep.subr.mxu0 0.0
        %573 = vmatpush1.msra.mxu0 0.0
        %574 = vmatprep.subr.mxu0 0.0
        %575 = vmatpush1.msra.mxu0 0.0
        %576 = vmatprep.subr.mxu0 0.0
        %577 = vmatpush1.msra.mxu0 0.0
        %578 = vmatprep.subr.mxu0 0.0
        %579 = vmatpush1.msra.mxu0 0.0
        %580 = vmatprep.subr.mxu0 0.0
        %581 = vmatpush1.msra.mxu0 0.0
        %582 = vmatprep.subr.mxu0 0.0
        %583 = vmatpush1.msra.mxu0 0.0
        %584 = vmatprep.subr.mxu0 0.0
        %585 = vmatpush1.msra.mxu0 0.0
        %586 = vmatprep.subr.mxu0 0.0
        %587 = vmatpush1.msra.mxu0 0.0
        %588 = vmatprep.subr.mxu0 0.0
        %589 = vmatpush1.msra.mxu0 0.0
        %590 = vmatprep.subr.mxu0 0.0
        %591 = vmatpush1.msra.mxu0 0.0
        %592 = vmatprep.subr.mxu0 0.0
        %593 = vmatpush1.msra.mxu0 0.0
        %594 = vmatprep.subr.mxu0 0.0
        %595 = vmatpush1.msra.mxu0 0.0
        %596 = vmatprep.subr.mxu0 0.0
        %597 = vmatpush1.msra.mxu0 0.0
        %598 = vmatprep.subr.mxu0 0.0
        %599 = vmatpush1.msra.mxu0 0.0
        %600 = vmatprep.subr.mxu0 0.0
        %601 = vmatpush1.msra.mxu0 0.0
        %602 = vmatprep.subr.mxu0 0.0
        %603 = vmatpush1.msra.mxu0 0.0
        %604 = vmatprep.subr.mxu0 0.0
        %605 = vmatpush1.msra.mxu0 0.0
        %606 = vmatprep.subr.mxu0 0.0
        %607 = vmatpush1.msra.mxu0 0.0
        %608 = vmatprep.subr.mxu0 0.0
        %609 = vmatpush1.msra.mxu0 0.0
        %610 = vmatprep.subr.mxu0 0.0
        %611 = vmatpush1.msra.mxu0 0.0
        %612 = vmatprep.subr.mxu0 0.0
        %613 = vmatpush1.msra.mxu0 0.0
        %614 = vmatprep.subr.mxu0 0.0
        %615 = vmatpush1.msra.mxu0 0.0
        %616 = vmatprep.mubr.f32.mxu0 0.0
        %617 = vmatmul.mubr.f32.gmra.mrb[0].mxu0 %v453
        %v618 = vpop.f32.mrb[0].mxu0
        %v619 = vadd.f32 %v449, %v618
        %v620 = vpop.f32.mrb[0].mxu0
        %621 = vmatprep.mubr.f32.mxu0 0.0
        %622 = vmatmul.mubr.f32.gmra.mrb[0].mxu0 %v456
        %v623 = vpop.f32.mrb[0].mxu0
        %v624 = vadd.f32 %v449, %v623
        %v625 = vpop.f32.mrb[0].mxu0
        %626 = vmatprep.mubr.f32.mxu0 0.0
        %627 = vmatmul.mubr.f32.gmra.mrb[0].mxu0 %v459
        %v628 = vpop.f32.mrb[0].mxu0
        %v629 = vadd.f32 %v449, %v628
        %v630 = vpop.f32.mrb[0].mxu0
        %631 = vmatprep.mubr.f32.mxu0 0.0
        %632 = vmatmul.mubr.f32.gmra.mrb[0].mxu0 %v462
        %v633 = vpop.f32.mrb[0].mxu0
        %v634 = vadd.f32 %v449, %v633
        %v635 = vpop.f32.mrb[0].mxu0
        %636 = vmatprep.mubr.f32.mxu0 0.0
        %637 = vmatmul.mubr.f32.gmra.mrb[0].mxu0 %v465
        %v638 = vpop.f32.mrb[0].mxu0
        %v639 = vadd.f32 %v449, %v638
        %v640 = vpop.f32.mrb[0].mxu0
        %641 = vmatprep.mubr.f32.mxu0 0.0
        %642 = vmatmul.mubr.f32.gmra.mrb[0].mxu0 %v468
        %v643 = vpop.f32.mrb[0].mxu0
        %v644 = vadd.f32 %v449, %v643
        %v645 = vpop.f32.mrb[0].mxu0
        %646 = vmatprep.mubr.f32.mxu0 0.0
        %647 = vmatmul.mubr.f32.gmra.mrb[0].mxu0 %v471
        %v648 = vpop.f32.mrb[0].mxu0
        %v649 = vadd.f32 %v449, %v648
        %v650 = vpop.f32.mrb[0].mxu0
        %651 = vmatprep.mubr.f32.mxu0 0.0
        %652 = vmatmul.mubr.f32.gmra.mrb[0].mxu0 %v474
        %v653 = vpop.f32.mrb[0].mxu0
        %v654 = vadd.f32 %v449, %v653
        %v655 = vpop.f32.mrb[0].mxu0
        %656 = vmatprep.mubr.f32.mxu0 0.0
        %657 = vmatmul.mubr.f32.gmra.mrb[0].mxu0 %v477
        %v658 = vpop.f32.mrb[0].mxu0
        %v659 = vadd.f32 %v449, %v658
        %v660 = vpop.f32.mrb[0].mxu0
        %661 = vmatprep.mubr.f32.mxu0 0.0
        %662 = vmatmul.mubr.f32.gmra.mrb[0].mxu0 %v480
        %v663 = vpop.f32.mrb[0].mxu0
        %v664 = vadd.f32 %v449, %v663
        %v665 = vpop.f32.mrb[0].mxu0
        %666 = vmatprep.mubr.f32.mxu0 0.0
        %667 = vmatmul.mubr.f32.gmra.mrb[0].mxu0 %v483
        %v668 = vpop.f32.mrb[0].mxu0
        %v669 = vadd.f32 %v449, %v668
        %v670 = vpop.f32.mrb[0].mxu0
        %671 = vmatprep.mubr.f32.mxu0 0.0
        %672 = vmatmul.mubr.f32.gmra.mrb[0].mxu0 %v486
        %v673 = vpop.f32.mrb[0].mxu0
        %v674 = vadd.f32 %v449, %v673
        %v675 = vpop.f32.mrb[0].mxu0
        %676 = vmatprep.mubr.f32.mxu0 0.0
        %677 = vmatmul.mubr.f32.gmra.mrb[0].mxu0 %v489
        %v678 = vpop.f32.mrb[0].mxu0
        %v679 = vadd.f32 %v449, %v678
        %v680 = vpop.f32.mrb[0].mxu0
        %681 = vmatprep.mubr.f32.mxu0 0.0
        %682 = vmatmul.mubr.f32.gmra.mrb[0].mxu0 %v492
        %v683 = vpop.f32.mrb[0].mxu0
        %v684 = vadd.f32 %v449, %v683
        %v685 = vpop.f32.mrb[0].mxu0
        %686 = vmatprep.mubr.f32.mxu0 0.0
        %687 = vmatmul.mubr.f32.gmra.mrb[0].mxu0 %v495
        %v688 = vpop.f32.mrb[0].mxu0
        %v689 = vadd.f32 %v449, %v688
        %v690 = vpop.f32.mrb[0].mxu0
        %691 = vmatprep.mubr.f32.mxu0 0.0
        %692 = vmatmul.mubr.f32.gmra.mrb[0].mxu0 %v498
        %v693 = vpop.f32.mrb[0].mxu0
        %v694 = vadd.f32 %v449, %v693
        %v695 = vpop.f32.mrb[0].mxu0
        %696 = vmatprep.mubr.f32.mxu0 0.0
        %697 = vmatmul.mubr.f32.gmra.mrb[0].mxu0 %v501
        %v698 = vpop.f32.mrb[0].mxu0
        %v699 = vadd.f32 %v449, %v698
        %v700 = vpop.f32.mrb[0].mxu0
        %701 = vmatprep.mubr.f32.mxu0 0.0
        %702 = vmatmul.mubr.f32.gmra.mrb[0].mxu0 %v504
        %v703 = vpop.f32.mrb[0].mxu0
        %v704 = vadd.f32 %v449, %v703
        %v705 = vpop.f32.mrb[0].mxu0
        %706 = vmatprep.mubr.f32.mxu0 0.0
        %707 = vmatmul.mubr.f32.gmra.mrb[0].mxu0 %v507
        %v708 = vpop.f32.mrb[0].mxu0
        %v709 = vadd.f32 %v449, %v708
        %v710 = vpop.f32.mrb[0].mxu0
        %711 = vmatprep.mubr.f32.mxu0 0.0
        %712 = vmatmul.mubr.f32.gmra.mrb[0].mxu0 %v510
        %v713 = vpop.f32.mrb[0].mxu0
        %v714 = vadd.f32 %v449, %v713
        %v715 = vpop.f32.mrb[0].mxu0
        %716 = vmatprep.mubr.f32.mxu0 0.0
        %717 = vmatmul.mubr.f32.gmra.mrb[0].mxu0 %v513
        %v718 = vpop.f32.mrb[0].mxu0
        %v719 = vadd.f32 %v449, %v718
        %v720 = vpop.f32.mrb[0].mxu0
        %721 = vmatprep.mubr.f32.mxu0 0.0
        %722 = vmatmul.mubr.f32.gmra.mrb[0].mxu0 %v516
        %v723 = vpop.f32.mrb[0].mxu0
        %v724 = vadd.f32 %v449, %v723
        %v725 = vpop.f32.mrb[0].mxu0
        %726 = vmatprep.mubr.f32.mxu0 0.0
        %727 = vmatmul.mubr.f32.gmra.mrb[0].mxu0 %v519
        %v728 = vpop.f32.mrb[0].mxu0
        %v729 = vadd.f32 %v449, %v728
        %v730 = vpop.f32.mrb[0].mxu0
        %731 = vmatprep.mubr.f32.mxu0 0.0
        %732 = vmatmul.mubr.f32.gmra.mrb[0].mxu0 %v522
        %v733 = vpop.f32.mrb[0].mxu0
        %v734 = vadd.f32 %v449, %v733
        %v735 = vpop.f32.mrb[0].mxu0
        %736 = vmatprep.mubr.f32.mxu0 0.0
        %737 = vmatmul.mubr.f32.gmra.mrb[0].mxu0 %v525
        %v738 = vpop.f32.mrb[0].mxu0
        %v739 = vadd.f32 %v449, %v738
        %v740 = vpop.f32.mrb[0].mxu0
        %741 = vmatprep.mubr.f32.mxu0 0.0
        %742 = vmatmul.mubr.f32.gmra.mrb[0].mxu0 %v528
        %v743 = vpop.f32.mrb[0].mxu0
        %v744 = vadd.f32 %v449, %v743
        %v745 = vpop.f32.mrb[0].mxu0
        %746 = vmatprep.mubr.f32.mxu0 0.0
        %747 = vmatmul.mubr.f32.gmra.mrb[0].mxu0 %v531
        %v748 = vpop.f32.mrb[0].mxu0
        %v749 = vadd.f32 %v449, %v748
        %v750 = vpop.f32.mrb[0].mxu0
        %751 = vmatprep.mubr.f32.mxu0 0.0
        %752 = vmatmul.mubr.f32.gmra.mrb[0].mxu0 %v534
        %v753 = vpop.f32.mrb[0].mxu0
        %v754 = vadd.f32 %v449, %v753
        %v755 = vpop.f32.mrb[0].mxu0
        %756 = vmatprep.mubr.f32.mxu0 0.0
        %757 = vmatmul.mubr.f32.gmra.mrb[0].mxu0 %v537
        %v758 = vpop.f32.mrb[0].mxu0
        %v759 = vadd.f32 %v449, %v758
        %v760 = vpop.f32.mrb[0].mxu0
        %761 = vmatprep.mubr.f32.mxu0 0.0
        %762 = vmatmul.mubr.f32.gmra.mrb[0].mxu0 %v540
        %v763 = vpop.f32.mrb[0].mxu0
        %v764 = vadd.f32 %v449, %v763
        %v765 = vpop.f32.mrb[0].mxu0
        %766 = vmatprep.mubr.f32.mxu0 0.0
        %767 = vmatmul.mubr.f32.gmra.mrb[0].mxu0 %v543
        %v768 = vpop.f32.mrb[0].mxu0
        %v769 = vadd.f32 %v449, %v768
        %v770 = vpop.f32.mrb[0].mxu0
        %771 = vmatprep.mubr.f32.mxu0 0.0
        %772 = vmatmul.mubr.f32.gmra.mrb[0].mxu0 %v546
        %v773 = vpop.f32.mrb[0].mxu0
        %v774 = vadd.f32 %v449, %v773
        %v775 = vpop.f32.mrb[0].mxu0
        %776 = vdwg.mxu0
        %v777 = vtanh.pop %v619
        %v778 = vtanh.pop %v624
        %v779 = vtanh.pop %v629
        %v780 = vtanh.pop %v634
        %v781 = vtanh.pop %v639
        %v782 = vtanh.pop %v644
        %v783 = vtanh.pop %v649
        %v784 = vtanh.pop %v654
        %v785 = vtanh.pop %v659
        %v786 = vtanh.pop %v664
        %v787 = vtanh.pop %v669
        %v788 = vtanh.pop %v674
        %v789 = vtanh.pop %v679
        %v790 = vtanh.pop %v684
        %v791 = vtanh.pop %v689
        %v792 = vtanh.pop %v694
        %v793 = vtanh.pop %v699
        %v794 = vtanh.pop %v704
        %v795 = vtanh.pop %v709
        %v796 = vtanh.pop %v714
        %v797 = vtanh.pop %v719
        %v798 = vtanh.pop %v724
        %v799 = vtanh.pop %v729
        %v800 = vtanh.pop %v734
        %v801 = vtanh.pop %v739
        %v802 = vtanh.pop %v744
        %v803 = vtanh.pop %v749
        %v804 = vtanh.pop %v754
        %v805 = vtanh.pop %v759
        %v806 = vtanh.pop %v764
        %v807 = vtanh.pop %v769
        %v808 = vtanh.pop %v774
        %v809 = vld [vmem:[%s407] sm:$0xff]
        %v810 = vld [vmem:[%s407 + $0x8] sm:$0xff]
        %v811 = vld [vmem:[%s407 + $0x10] sm:$0xff]
        %v812 = vld [vmem:[%s407 + $0x18] sm:$0xff]
        %v813 = vld [vmem:[%s407 + $0x20] sm:$0xff]
        %v814 = vld [vmem:[%s407 + $0x28] sm:$0xff]
        %v815 = vld [vmem:[%s407 + $0x30] sm:$0xff]
        %v816 = vld [vmem:[%s407 + $0x38] sm:$0xff]
        %v817 = vld [vmem:[%s407 + $0x40] sm:$0xff]
        %v818 = vld [vmem:[%s407 + $0x48] sm:$0xff]
        %v819 = vld [vmem:[%s407 + $0x50] sm:$0xff]
        %v820 = vld [vmem:[%s407 + $0x58] sm:$0xff]
        %v821 = vld [vmem:[%s407 + $0x60] sm:$0xff]
        %v822 = vld [vmem:[%s407 + $0x68] sm:$0xff]
        %v823 = vld [vmem:[%s407 + $0x70] sm:$0xff]
        %v824 = vld [vmem:[%s407 + $0x78] sm:$0xff]
        %v825 = vld [vmem:[%s407 + $0x80] sm:$0xff]
        %v826 = vld [vmem:[%s407 + $0x88] sm:$0xff]
        %v827 = vld [vmem:[%s407 + $0x90] sm:$0xff]
        %v828 = vld [vmem:[%s407 + $0x98] sm:$0xff]
        %v829 = vld [vmem:[%s407 + $0xa0] sm:$0xff]
        %v830 = vld [vmem:[%s407 + $0xa8] sm:$0xff]
        %v831 = vld [vmem:[%s407 + $0xb0] sm:$0xff]
        %v832 = vld [vmem:[%s407 + $0xb8] sm:$0xff]
        %v833 = vld [vmem:[%s407 + $0xc0] sm:$0xff]
        %v834 = vld [vmem:[%s407 + $0xc8] sm:$0xff]
        %v835 = vld [vmem:[%s407 + $0xd0] sm:$0xff]
        %v836 = vld [vmem:[%s407 + $0xd8] sm:$0xff]
        %v837 = vld [vmem:[%s407 + $0xe0] sm:$0xff]
        %v838 = vld [vmem:[%s407 + $0xe8] sm:$0xff]
        %v839 = vld [vmem:[%s407 + $0xf0] sm:$0xff]
        %v840 = vld [vmem:[%s407 + $0xf8] sm:$0xff]
        %v841 = vld [vmem:[%s4] sm:$0xff]
        %v842 = vld [vmem:[%s4 + $0x8] sm:$0xff]
        %v843 = vld [vmem:[%s4 + $0x10] sm:$0xf]
        %v844 = vld [vmem:[%s5] sm:$0x1]
        %v846 = vlaneseq
        %v847 = vshrl.u32 %v846, 7
        %v848 = vsub.s32 0, %v847
        %v849 = vrot.slane %v844, %v848
        %vm851 = vcmask 162816
        %v853 = vsel %vm851, %v809, 0
        %v856 = vsel %vm851, %v810, 0
        %v859 = vsel %vm851, %v811, 0
        %v862 = vsel %vm851, %v812, 0
        %v865 = vsel %vm851, %v813, 0
        %v868 = vsel %vm851, %v814, 0
        %v871 = vsel %vm851, %v815, 0
        %v874 = vsel %vm851, %v816, 0
        %v877 = vsel %vm851, %v817, 0
        %v880 = vsel %vm851, %v818, 0
        %v883 = vsel %vm851, %v819, 0
        %v886 = vsel %vm851, %v820, 0
        %v889 = vsel %vm851, %v821, 0
        %v892 = vsel %vm851, %v822, 0
        %v895 = vsel %vm851, %v823, 0
        %v898 = vsel %vm851, %v824, 0
        %v901 = vsel %vm851, %v825, 0
        %v904 = vsel %vm851, %v826, 0
        %v907 = vsel %vm851, %v827, 0
        %v910 = vsel %vm851, %v828, 0
        %v913 = vsel %vm851, %v829, 0
        %v916 = vsel %vm851, %v830, 0
        %v919 = vsel %vm851, %v831, 0
        %v922 = vsel %vm851, %v832, 0
        %v925 = vsel %vm851, %v833, 0
        %v928 = vsel %vm851, %v834, 0
        %v931 = vsel %vm851, %v835, 0
        %v934 = vsel %vm851, %v836, 0
        %v937 = vsel %vm851, %v837, 0
        %v940 = vsel %vm851, %v838, 0
        %v943 = vsel %vm851, %v839, 0
        %v946 = vsel %vm851, %v840, 0
        %v949 = vsel %vm548, %v843, 0
        %951 = vmatprep.subr.mxu0 0.0
        %952 = vmatpush1.msra.mxu0 %v841
        %953 = vmatprep.subr.mxu0 0.0
        %954 = vmatpush1.msra.mxu0 %v842
        %955 = vmatprep.subr.mxu0 0.0
        %956 = vmatpush1.msra.mxu0 %v949
        %957 = vmatprep.subr.mxu0 0.0
        %958 = vmatpush1.msra.mxu0 0.0
        %959 = vmatprep.subr.mxu0 0.0
        %960 = vmatpush1.msra.mxu0 0.0
        %961 = vmatprep.subr.mxu0 0.0
        %962 = vmatpush1.msra.mxu0 0.0
        %963 = vmatprep.subr.mxu0 0.0
        %964 = vmatpush1.msra.mxu0 0.0
        %965 = vmatprep.subr.mxu0 0.0
        %966 = vmatpush1.msra.mxu0 0.0
        %967 = vmatprep.subr.mxu0 0.0
        %968 = vmatpush1.msra.mxu0 0.0
        %969 = vmatprep.subr.mxu0 0.0
        %970 = vmatpush1.msra.mxu0 0.0
        %971 = vmatprep.subr.mxu0 0.0
        %972 = vmatpush1.msra.mxu0 0.0
        %973 = vmatprep.subr.mxu0 0.0
        %974 = vmatpush1.msra.mxu0 0.0
        %975 = vmatprep.subr.mxu0 0.0
        %976 = vmatpush1.msra.mxu0 0.0
        %977 = vmatprep.subr.mxu0 0.0
        %978 = vmatpush1.msra.mxu0 0.0
        %979 = vmatprep.subr.mxu0 0.0
        %980 = vmatpush1.msra.mxu0 0.0
        %981 = vmatprep.subr.mxu0 0.0
        %982 = vmatpush1.msra.mxu0 0.0
        %983 = vmatprep.subr.mxu0 0.0
        %984 = vmatpush1.msra.mxu0 0.0
        %985 = vmatprep.subr.mxu0 0.0
        %986 = vmatpush1.msra.mxu0 0.0
        %987 = vmatprep.subr.mxu0 0.0
        %988 = vmatpush1.msra.mxu0 0.0
        %989 = vmatprep.subr.mxu0 0.0
        %990 = vmatpush1.msra.mxu0 0.0
        %991 = vmatprep.subr.mxu0 0.0
        %992 = vmatpush1.msra.mxu0 0.0
        %993 = vmatprep.subr.mxu0 0.0
        %994 = vmatpush1.msra.mxu0 0.0
        %995 = vmatprep.subr.mxu0 0.0
        %996 = vmatpush1.msra.mxu0 0.0
        %997 = vmatprep.subr.mxu0 0.0
        %998 = vmatpush1.msra.mxu0 0.0
        %999 = vmatprep.subr.mxu0 0.0
        %1000 = vmatpush1.msra.mxu0 0.0
        %1001 = vmatprep.subr.mxu0 0.0
        %1002 = vmatpush1.msra.mxu0 0.0
        %1003 = vmatprep.subr.mxu0 0.0
        %1004 = vmatpush1.msra.mxu0 0.0
        %1005 = vmatprep.subr.mxu0 0.0
        %1006 = vmatpush1.msra.mxu0 0.0
        %1007 = vmatprep.subr.mxu0 0.0
        %1008 = vmatpush1.msra.mxu0 0.0
        %1009 = vmatprep.subr.mxu0 0.0
        %1010 = vmatpush1.msra.mxu0 0.0
        %1011 = vmatprep.subr.mxu0 0.0
        %1012 = vmatpush1.msra.mxu0 0.0
        %1013 = vmatprep.subr.mxu0 0.0
        %1014 = vmatpush1.msra.mxu0 0.0
        %1015 = vmatprep.mubr.f32.mxu0 0.0
        %1016 = vmatmul.mubr.f32.gmra.mrb[0].mxu0 %v853
        %v1017 = vpop.f32.mrb[0].mxu0
        %v1018 = vadd.f32 %v849, %v1017
        %v1019 = vpop.f32.mrb[0].mxu0
        %1020 = vmatprep.mubr.f32.mxu0 0.0
        %1021 = vmatmul.mubr.f32.gmra.mrb[0].mxu0 %v856
        %v1022 = vpop.f32.mrb[0].mxu0
        %v1023 = vadd.f32 %v849, %v1022
        %v1024 = vpop.f32.mrb[0].mxu0
        %1025 = vmatprep.mubr.f32.mxu0 0.0
        %1026 = vmatmul.mubr.f32.gmra.mrb[0].mxu0 %v859
        %v1027 = vpop.f32.mrb[0].mxu0
        %v1028 = vadd.f32 %v849, %v1027
        %v1029 = vpop.f32.mrb[0].mxu0
        %1030 = vmatprep.mubr.f32.mxu0 0.0
        %1031 = vmatmul.mubr.f32.gmra.mrb[0].mxu0 %v862
        %v1032 = vpop.f32.mrb[0].mxu0
        %v1033 = vadd.f32 %v849, %v1032
        %v1034 = vpop.f32.mrb[0].mxu0
        %1035 = vmatprep.mubr.f32.mxu0 0.0
        %1036 = vmatmul.mubr.f32.gmra.mrb[0].mxu0 %v865
        %v1037 = vpop.f32.mrb[0].mxu0
        %v1038 = vadd.f32 %v849, %v1037
        %v1039 = vpop.f32.mrb[0].mxu0
        %1040 = vmatprep.mubr.f32.mxu0 0.0
        %1041 = vmatmul.mubr.f32.gmra.mrb[0].mxu0 %v868
        %v1042 = vpop.f32.mrb[0].mxu0
        %v1043 = vadd.f32 %v849, %v1042
        %v1044 = vpop.f32.mrb[0].mxu0
        %1045 = vmatprep.mubr.f32.mxu0 0.0
        %1046 = vmatmul.mubr.f32.gmra.mrb[0].mxu0 %v871
        %v1047 = vpop.f32.mrb[0].mxu0
        %v1048 = vadd.f32 %v849, %v1047
        %v1049 = vpop.f32.mrb[0].mxu0
        %1050 = vmatprep.mubr.f32.mxu0 0.0
        %1051 = vmatmul.mubr.f32.gmra.mrb[0].mxu0 %v874
        %v1052 = vpop.f32.mrb[0].mxu0
        %v1053 = vadd.f32 %v849, %v1052
        %v1054 = vpop.f32.mrb[0].mxu0
        %1055 = vmatprep.mubr.f32.mxu0 0.0
        %1056 = vmatmul.mubr.f32.gmra.mrb[0].mxu0 %v877
        %v1057 = vpop.f32.mrb[0].mxu0
        %v1058 = vadd.f32 %v849, %v1057
        %v1059 = vpop.f32.mrb[0].mxu0
        %1060 = vmatprep.mubr.f32.mxu0 0.0
        %1061 = vmatmul.mubr.f32.gmra.mrb[0].mxu0 %v880
        %v1062 = vpop.f32.mrb[0].mxu0
        %v1063 = vadd.f32 %v849, %v1062
        %v1064 = vpop.f32.mrb[0].mxu0
        %1065 = vmatprep.mubr.f32.mxu0 0.0
        %1066 = vmatmul.mubr.f32.gmra.mrb[0].mxu0 %v883
        %v1067 = vpop.f32.mrb[0].mxu0
        %v1068 = vadd.f32 %v849, %v1067
        %v1069 = vpop.f32.mrb[0].mxu0
        %1070 = vmatprep.mubr.f32.mxu0 0.0
        %1071 = vmatmul.mubr.f32.gmra.mrb[0].mxu0 %v886
        %v1072 = vpop.f32.mrb[0].mxu0
        %v1073 = vadd.f32 %v849, %v1072
        %v1074 = vpop.f32.mrb[0].mxu0
        %1075 = vmatprep.mubr.f32.mxu0 0.0
        %1076 = vmatmul.mubr.f32.gmra.mrb[0].mxu0 %v889
        %v1077 = vpop.f32.mrb[0].mxu0
        %v1078 = vadd.f32 %v849, %v1077
        %v1079 = vpop.f32.mrb[0].mxu0
        %1080 = vmatprep.mubr.f32.mxu0 0.0
        %1081 = vmatmul.mubr.f32.gmra.mrb[0].mxu0 %v892
        %v1082 = vpop.f32.mrb[0].mxu0
        %v1083 = vadd.f32 %v849, %v1082
        %v1084 = vpop.f32.mrb[0].mxu0
        %1085 = vmatprep.mubr.f32.mxu0 0.0
        %1086 = vmatmul.mubr.f32.gmra.mrb[0].mxu0 %v895
        %v1087 = vpop.f32.mrb[0].mxu0
        %v1088 = vadd.f32 %v849, %v1087
        %v1089 = vpop.f32.mrb[0].mxu0
        %1090 = vmatprep.mubr.f32.mxu0 0.0
        %1091 = vmatmul.mubr.f32.gmra.mrb[0].mxu0 %v898
        %v1092 = vpop.f32.mrb[0].mxu0
        %v1093 = vadd.f32 %v849, %v1092
        %v1094 = vpop.f32.mrb[0].mxu0
        %1095 = vmatprep.mubr.f32.mxu0 0.0
        %1096 = vmatmul.mubr.f32.gmra.mrb[0].mxu0 %v901
        %v1097 = vpop.f32.mrb[0].mxu0
        %v1098 = vadd.f32 %v849, %v1097
        %v1099 = vpop.f32.mrb[0].mxu0
        %1100 = vmatprep.mubr.f32.mxu0 0.0
        %1101 = vmatmul.mubr.f32.gmra.mrb[0].mxu0 %v904
        %v1102 = vpop.f32.mrb[0].mxu0
        %v1103 = vadd.f32 %v849, %v1102
        %v1104 = vpop.f32.mrb[0].mxu0
        %1105 = vmatprep.mubr.f32.mxu0 0.0
        %1106 = vmatmul.mubr.f32.gmra.mrb[0].mxu0 %v907
        %v1107 = vpop.f32.mrb[0].mxu0
        %v1108 = vadd.f32 %v849, %v1107
        %v1109 = vpop.f32.mrb[0].mxu0
        %1110 = vmatprep.mubr.f32.mxu0 0.0
        %1111 = vmatmul.mubr.f32.gmra.mrb[0].mxu0 %v910
        %v1112 = vpop.f32.mrb[0].mxu0
        %v1113 = vadd.f32 %v849, %v1112
        %v1114 = vpop.f32.mrb[0].mxu0
        %1115 = vmatprep.mubr.f32.mxu0 0.0
        %1116 = vmatmul.mubr.f32.gmra.mrb[0].mxu0 %v913
        %v1117 = vpop.f32.mrb[0].mxu0
        %v1118 = vadd.f32 %v849, %v1117
        %v1119 = vpop.f32.mrb[0].mxu0
        %1120 = vmatprep.mubr.f32.mxu0 0.0
        %1121 = vmatmul.mubr.f32.gmra.mrb[0].mxu0 %v916
        %v1122 = vpop.f32.mrb[0].mxu0
        %v1123 = vadd.f32 %v849, %v1122
        %v1124 = vpop.f32.mrb[0].mxu0
        %1125 = vmatprep.mubr.f32.mxu0 0.0
        %1126 = vmatmul.mubr.f32.gmra.mrb[0].mxu0 %v919
        %v1127 = vpop.f32.mrb[0].mxu0
        %v1128 = vadd.f32 %v849, %v1127
        %v1129 = vpop.f32.mrb[0].mxu0
        %1130 = vmatprep.mubr.f32.mxu0 0.0
        %1131 = vmatmul.mubr.f32.gmra.mrb[0].mxu0 %v922
        %v1132 = vpop.f32.mrb[0].mxu0
        %v1133 = vadd.f32 %v849, %v1132
        %v1134 = vpop.f32.mrb[0].mxu0
        %1135 = vmatprep.mubr.f32.mxu0 0.0
        %1136 = vmatmul.mubr.f32.gmra.mrb[0].mxu0 %v925
        %v1137 = vpop.f32.mrb[0].mxu0
        %v1138 = vadd.f32 %v849, %v1137
        %v1139 = vpop.f32.mrb[0].mxu0
        %1140 = vmatprep.mubr.f32.mxu0 0.0
        %1141 = vmatmul.mubr.f32.gmra.mrb[0].mxu0 %v928
        %v1142 = vpop.f32.mrb[0].mxu0
        %v1143 = vadd.f32 %v849, %v1142
        %v1144 = vpop.f32.mrb[0].mxu0
        %1145 = vmatprep.mubr.f32.mxu0 0.0
        %1146 = vmatmul.mubr.f32.gmra.mrb[0].mxu0 %v931
        %v1147 = vpop.f32.mrb[0].mxu0
        %v1148 = vadd.f32 %v849, %v1147
        %v1149 = vpop.f32.mrb[0].mxu0
        %1150 = vmatprep.mubr.f32.mxu0 0.0
        %1151 = vmatmul.mubr.f32.gmra.mrb[0].mxu0 %v934
        %v1152 = vpop.f32.mrb[0].mxu0
        %v1153 = vadd.f32 %v849, %v1152
        %v1154 = vpop.f32.mrb[0].mxu0
        %1155 = vmatprep.mubr.f32.mxu0 0.0
        %1156 = vmatmul.mubr.f32.gmra.mrb[0].mxu0 %v937
        %v1157 = vpop.f32.mrb[0].mxu0
        %v1158 = vadd.f32 %v849, %v1157
        %v1159 = vpop.f32.mrb[0].mxu0
        %1160 = vmatprep.mubr.f32.mxu0 0.0
        %1161 = vmatmul.mubr.f32.gmra.mrb[0].mxu0 %v940
        %v1162 = vpop.f32.mrb[0].mxu0
        %v1163 = vadd.f32 %v849, %v1162
        %v1164 = vpop.f32.mrb[0].mxu0
        %1165 = vmatprep.mubr.f32.mxu0 0.0
        %1166 = vmatmul.mubr.f32.gmra.mrb[0].mxu0 %v943
        %v1167 = vpop.f32.mrb[0].mxu0
        %v1168 = vadd.f32 %v849, %v1167
        %v1169 = vpop.f32.mrb[0].mxu0
        %1170 = vmatprep.mubr.f32.mxu0 0.0
        %1171 = vmatmul.mubr.f32.gmra.mrb[0].mxu0 %v946
        %v1172 = vpop.f32.mrb[0].mxu0
        %v1173 = vadd.f32 %v849, %v1172
        %v1174 = vpop.f32.mrb[0].mxu0
        %1175 = vdwg.mxu0
        %v1176 = vtanh.pop %v1018
        %v1177 = vtanh.pop %v1023
        %v1178 = vtanh.pop %v1028
        %v1179 = vtanh.pop %v1033
        %v1180 = vtanh.pop %v1038
        %v1181 = vtanh.pop %v1043
        %v1182 = vtanh.pop %v1048
        %v1183 = vtanh.pop %v1053
        %v1184 = vtanh.pop %v1058
        %v1185 = vtanh.pop %v1063
        %v1186 = vtanh.pop %v1068
        %v1187 = vtanh.pop %v1073
        %v1188 = vtanh.pop %v1078
        %v1189 = vtanh.pop %v1083
        %v1190 = vtanh.pop %v1088
        %v1191 = vtanh.pop %v1093
        %v1192 = vtanh.pop %v1098
        %v1193 = vtanh.pop %v1103
        %v1194 = vtanh.pop %v1108
        %v1195 = vtanh.pop %v1113
        %v1196 = vtanh.pop %v1118
        %v1197 = vtanh.pop %v1123
        %v1198 = vtanh.pop %v1128
        %v1199 = vtanh.pop %v1133
        %v1200 = vtanh.pop %v1138
        %v1201 = vtanh.pop %v1143
        %v1202 = vtanh.pop %v1148
        %v1203 = vtanh.pop %v1153
        %v1204 = vtanh.pop %v1158
        %v1205 = vtanh.pop %v1163
        %v1206 = vtanh.pop %v1168
        %v1207 = vtanh.pop %v1173
        %v1208 = vld [vmem:[%s6] sm:$0xff]
        %v1209 = vld [vmem:[%s6 + $0x8] sm:$0xff]
        %v1210 = vld [vmem:[%s6 + $0x10] sm:$0xff]
        %v1211 = vld [vmem:[%s6 + $0x18] sm:$0xff]
        %v1212 = vld [vmem:[%s7] sm:$0x1]
        %v1213 = vld [vmem:[%s8] sm:$0x1]
        %v1215 = vlaneseq
        %v1216 = vshrl.u32 %v1215, 7
        %v1217 = vsub.s32 0, %v1216
        %v1218 = vrot.slane %v1212, %v1217
        %vm1220 = vcmask 261120
        %v1222 = vsel %vm1220, %v777, 0
        %v1225 = vsel %vm1220, %v778, 0
        %v1228 = vsel %vm1220, %v779, 0
        %v1231 = vsel %vm1220, %v780, 0
        %v1234 = vsel %vm1220, %v781, 0
        %v1237 = vsel %vm1220, %v782, 0
        %v1240 = vsel %vm1220, %v783, 0
        %v1243 = vsel %vm1220, %v784, 0
        %v1246 = vsel %vm1220, %v785, 0
        %v1249 = vsel %vm1220, %v786, 0
        %v1252 = vsel %vm1220, %v787, 0
        %v1255 = vsel %vm1220, %v788, 0
        %v1258 = vsel %vm1220, %v789, 0
        %v1261 = vsel %vm1220, %v790, 0
        %v1264 = vsel %vm1220, %v791, 0
        %v1267 = vsel %vm1220, %v792, 0
        %v1270 = vsel %vm1220, %v793, 0
        %v1273 = vsel %vm1220, %v794, 0
        %v1276 = vsel %vm1220, %v795, 0
        %v1279 = vsel %vm1220, %v796, 0
        %v1282 = vsel %vm1220, %v797, 0
        %v1285 = vsel %vm1220, %v798, 0
        %v1288 = vsel %vm1220, %v799, 0
        %v1291 = vsel %vm1220, %v800, 0
        %v1294 = vsel %vm1220, %v801, 0
        %v1297 = vsel %vm1220, %v802, 0
        %v1300 = vsel %vm1220, %v803, 0
        %v1303 = vsel %vm1220, %v804, 0
        %v1306 = vsel %vm1220, %v805, 0
        %v1309 = vsel %vm1220, %v806, 0
        %v1312 = vsel %vm1220, %v807, 0
        %v1315 = vsel %vm1220, %v808, 0
        %1317 = vmatprep.subr.mxu0 0.0
        %1318 = vmatpush1.msra.mxu0 %v1208
        %1319 = vmatprep.subr.mxu0 0.0
        %1320 = vmatpush1.msra.mxu0 %v1209
        %1321 = vmatprep.subr.mxu0 0.0
        %1322 = vmatpush1.msra.mxu0 %v1210
        %1323 = vmatprep.subr.mxu0 0.0
        %1324 = vmatpush1.msra.mxu0 %v1211
        %1325 = vmatprep.subr.mxu0 0.0
        %1326 = vmatpush1.msra.mxu0 0.0
        %1327 = vmatprep.subr.mxu0 0.0
        %1328 = vmatpush1.msra.mxu0 0.0
        %1329 = vmatprep.subr.mxu0 0.0
        %1330 = vmatpush1.msra.mxu0 0.0
        %1331 = vmatprep.subr.mxu0 0.0
        %1332 = vmatpush1.msra.mxu0 0.0
        %1333 = vmatprep.subr.mxu0 0.0
        %1334 = vmatpush1.msra.mxu0 0.0
        %1335 = vmatprep.subr.mxu0 0.0
        %1336 = vmatpush1.msra.mxu0 0.0
        %1337 = vmatprep.subr.mxu0 0.0
        %1338 = vmatpush1.msra.mxu0 0.0
        %1339 = vmatprep.subr.mxu0 0.0
        %1340 = vmatpush1.msra.mxu0 0.0
        %1341 = vmatprep.subr.mxu0 0.0
        %1342 = vmatpush1.msra.mxu0 0.0
        %1343 = vmatprep.subr.mxu0 0.0
        %1344 = vmatpush1.msra.mxu0 0.0
        %1345 = vmatprep.subr.mxu0 0.0
        %1346 = vmatpush1.msra.mxu0 0.0
        %1347 = vmatprep.subr.mxu0 0.0
        %1348 = vmatpush1.msra.mxu0 0.0
        %1349 = vmatprep.subr.mxu0 0.0
        %1350 = vmatpush1.msra.mxu0 0.0
        %1351 = vmatprep.subr.mxu0 0.0
        %1352 = vmatpush1.msra.mxu0 0.0
        %1353 = vmatprep.subr.mxu0 0.0
        %1354 = vmatpush1.msra.mxu0 0.0
        %1355 = vmatprep.subr.mxu0 0.0
        %1356 = vmatpush1.msra.mxu0 0.0
        %1357 = vmatprep.subr.mxu0 0.0
        %1358 = vmatpush1.msra.mxu0 0.0
        %1359 = vmatprep.subr.mxu0 0.0
        %1360 = vmatpush1.msra.mxu0 0.0
        %1361 = vmatprep.subr.mxu0 0.0
        %1362 = vmatpush1.msra.mxu0 0.0
        %1363 = vmatprep.subr.mxu0 0.0
        %1364 = vmatpush1.msra.mxu0 0.0
        %1365 = vmatprep.subr.mxu0 0.0
        %1366 = vmatpush1.msra.mxu0 0.0
        %1367 = vmatprep.subr.mxu0 0.0
        %1368 = vmatpush1.msra.mxu0 0.0
        %1369 = vmatprep.subr.mxu0 0.0
        %1370 = vmatpush1.msra.mxu0 0.0
        %1371 = vmatprep.subr.mxu0 0.0
        %1372 = vmatpush1.msra.mxu0 0.0
        %1373 = vmatprep.subr.mxu0 0.0
        %1374 = vmatpush1.msra.mxu0 0.0
        %1375 = vmatprep.subr.mxu0 0.0
        %1376 = vmatpush1.msra.mxu0 0.0
        %1377 = vmatprep.subr.mxu0 0.0
        %1378 = vmatpush1.msra.mxu0 0.0
        %1379 = vmatprep.subr.mxu0 0.0
        %1380 = vmatpush1.msra.mxu0 0.0
        %1381 = vmatprep.mubr.f32.mxu0 0.0
        %1382 = vmatmul.mubr.f32.gmra.mrb[0].mxu0 %v1222
        %v1383 = vpop.f32.mrb[0].mxu0
        %v1384 = vadd.f32 %v1218, %v1383
        %v1385 = vpop.f32.mrb[0].mxu0
        %1386 = vmatprep.mubr.f32.mxu0 0.0
        %1387 = vmatmul.mubr.f32.gmra.mrb[0].mxu0 %v1225
        %v1388 = vpop.f32.mrb[0].mxu0
        %v1389 = vadd.f32 %v1218, %v1388
        %v1390 = vpop.f32.mrb[0].mxu0
        %1391 = vmatprep.mubr.f32.mxu0 0.0
        %1392 = vmatmul.mubr.f32.gmra.mrb[0].mxu0 %v1228
        %v1393 = vpop.f32.mrb[0].mxu0
        %v1394 = vadd.f32 %v1218, %v1393
        %v1395 = vpop.f32.mrb[0].mxu0
        %1396 = vmatprep.mubr.f32.mxu0 0.0
        %1397 = vmatmul.mubr.f32.gmra.mrb[0].mxu0 %v1231
        %v1398 = vpop.f32.mrb[0].mxu0
        %v1399 = vadd.f32 %v1218, %v1398
        %v1400 = vpop.f32.mrb[0].mxu0
        %1401 = vmatprep.mubr.f32.mxu0 0.0
        %1402 = vmatmul.mubr.f32.gmra.mrb[0].mxu0 %v1234
        %v1403 = vpop.f32.mrb[0].mxu0
        %v1404 = vadd.f32 %v1218, %v1403
        %v1405 = vpop.f32.mrb[0].mxu0
        %1406 = vmatprep.mubr.f32.mxu0 0.0
        %1407 = vmatmul.mubr.f32.gmra.mrb[0].mxu0 %v1237
        %v1408 = vpop.f32.mrb[0].mxu0
        %v1409 = vadd.f32 %v1218, %v1408
        %v1410 = vpop.f32.mrb[0].mxu0
        %1411 = vmatprep.mubr.f32.mxu0 0.0
        %1412 = vmatmul.mubr.f32.gmra.mrb[0].mxu0 %v1240
        %v1413 = vpop.f32.mrb[0].mxu0
        %v1414 = vadd.f32 %v1218, %v1413
        %v1415 = vpop.f32.mrb[0].mxu0
        %1416 = vmatprep.mubr.f32.mxu0 0.0
        %1417 = vmatmul.mubr.f32.gmra.mrb[0].mxu0 %v1243
        %v1418 = vpop.f32.mrb[0].mxu0
        %v1419 = vadd.f32 %v1218, %v1418
        %v1420 = vpop.f32.mrb[0].mxu0
        %1421 = vmatprep.mubr.f32.mxu0 0.0
        %1422 = vmatmul.mubr.f32.gmra.mrb[0].mxu0 %v1246
        %v1423 = vpop.f32.mrb[0].mxu0
        %v1424 = vadd.f32 %v1218, %v1423
        %v1425 = vpop.f32.mrb[0].mxu0
        %1426 = vmatprep.mubr.f32.mxu0 0.0
        %1427 = vmatmul.mubr.f32.gmra.mrb[0].mxu0 %v1249
        %v1428 = vpop.f32.mrb[0].mxu0
        %v1429 = vadd.f32 %v1218, %v1428
        %v1430 = vpop.f32.mrb[0].mxu0
        %1431 = vmatprep.mubr.f32.mxu0 0.0
        %1432 = vmatmul.mubr.f32.gmra.mrb[0].mxu0 %v1252
        %v1433 = vpop.f32.mrb[0].mxu0
        %v1434 = vadd.f32 %v1218, %v1433
        %v1435 = vpop.f32.mrb[0].mxu0
        %1436 = vmatprep.mubr.f32.mxu0 0.0
        %1437 = vmatmul.mubr.f32.gmra.mrb[0].mxu0 %v1255
        %v1438 = vpop.f32.mrb[0].mxu0
        %v1439 = vadd.f32 %v1218, %v1438
        %v1440 = vpop.f32.mrb[0].mxu0
        %1441 = vmatprep.mubr.f32.mxu0 0.0
        %1442 = vmatmul.mubr.f32.gmra.mrb[0].mxu0 %v1258
        %v1443 = vpop.f32.mrb[0].mxu0
        %v1444 = vadd.f32 %v1218, %v1443
        %v1445 = vpop.f32.mrb[0].mxu0
        %1446 = vmatprep.mubr.f32.mxu0 0.0
        %1447 = vmatmul.mubr.f32.gmra.mrb[0].mxu0 %v1261
        %v1448 = vpop.f32.mrb[0].mxu0
        %v1449 = vadd.f32 %v1218, %v1448
        %v1450 = vpop.f32.mrb[0].mxu0
        %1451 = vmatprep.mubr.f32.mxu0 0.0
        %1452 = vmatmul.mubr.f32.gmra.mrb[0].mxu0 %v1264
        %v1453 = vpop.f32.mrb[0].mxu0
        %v1454 = vadd.f32 %v1218, %v1453
        %v1455 = vpop.f32.mrb[0].mxu0
        %1456 = vmatprep.mubr.f32.mxu0 0.0
        %1457 = vmatmul.mubr.f32.gmra.mrb[0].mxu0 %v1267
        %v1458 = vpop.f32.mrb[0].mxu0
        %v1459 = vadd.f32 %v1218, %v1458
        %v1460 = vpop.f32.mrb[0].mxu0
        %1461 = vmatprep.mubr.f32.mxu0 0.0
        %1462 = vmatmul.mubr.f32.gmra.mrb[0].mxu0 %v1270
        %v1463 = vpop.f32.mrb[0].mxu0
        %v1464 = vadd.f32 %v1218, %v1463
        %v1465 = vpop.f32.mrb[0].mxu0
        %1466 = vmatprep.mubr.f32.mxu0 0.0
        %1467 = vmatmul.mubr.f32.gmra.mrb[0].mxu0 %v1273
        %v1468 = vpop.f32.mrb[0].mxu0
        %v1469 = vadd.f32 %v1218, %v1468
        %v1470 = vpop.f32.mrb[0].mxu0
        %1471 = vmatprep.mubr.f32.mxu0 0.0
        %1472 = vmatmul.mubr.f32.gmra.mrb[0].mxu0 %v1276
        %v1473 = vpop.f32.mrb[0].mxu0
        %v1474 = vadd.f32 %v1218, %v1473
        %v1475 = vpop.f32.mrb[0].mxu0
        %1476 = vmatprep.mubr.f32.mxu0 0.0
        %1477 = vmatmul.mubr.f32.gmra.mrb[0].mxu0 %v1279
        %v1478 = vpop.f32.mrb[0].mxu0
        %v1479 = vadd.f32 %v1218, %v1478
        %v1480 = vpop.f32.mrb[0].mxu0
        %1481 = vmatprep.mubr.f32.mxu0 0.0
        %1482 = vmatmul.mubr.f32.gmra.mrb[0].mxu0 %v1282
        %v1483 = vpop.f32.mrb[0].mxu0
        %v1484 = vadd.f32 %v1218, %v1483
        %v1485 = vpop.f32.mrb[0].mxu0
        %1486 = vmatprep.mubr.f32.mxu0 0.0
        %1487 = vmatmul.mubr.f32.gmra.mrb[0].mxu0 %v1285
        %v1488 = vpop.f32.mrb[0].mxu0
        %v1489 = vadd.f32 %v1218, %v1488
        %v1490 = vpop.f32.mrb[0].mxu0
        %1491 = vmatprep.mubr.f32.mxu0 0.0
        %1492 = vmatmul.mubr.f32.gmra.mrb[0].mxu0 %v1288
        %v1493 = vpop.f32.mrb[0].mxu0
        %v1494 = vadd.f32 %v1218, %v1493
        %v1495 = vpop.f32.mrb[0].mxu0
        %1496 = vmatprep.mubr.f32.mxu0 0.0
        %1497 = vmatmul.mubr.f32.gmra.mrb[0].mxu0 %v1291
        %v1498 = vpop.f32.mrb[0].mxu0
        %v1499 = vadd.f32 %v1218, %v1498
        %v1500 = vpop.f32.mrb[0].mxu0
        %1501 = vmatprep.mubr.f32.mxu0 0.0
        %1502 = vmatmul.mubr.f32.gmra.mrb[0].mxu0 %v1294
        %v1503 = vpop.f32.mrb[0].mxu0
        %v1504 = vadd.f32 %v1218, %v1503
        %v1505 = vpop.f32.mrb[0].mxu0
        %1506 = vmatprep.mubr.f32.mxu0 0.0
        %1507 = vmatmul.mubr.f32.gmra.mrb[0].mxu0 %v1297
        %v1508 = vpop.f32.mrb[0].mxu0
        %v1509 = vadd.f32 %v1218, %v1508
        %v1510 = vpop.f32.mrb[0].mxu0
        %1511 = vmatprep.mubr.f32.mxu0 0.0
        %1512 = vmatmul.mubr.f32.gmra.mrb[0].mxu0 %v1300
        %v1513 = vpop.f32.mrb[0].mxu0
        %v1514 = vadd.f32 %v1218, %v1513
        %v1515 = vpop.f32.mrb[0].mxu0
        %1516 = vmatprep.mubr.f32.mxu0 0.0
        %1517 = vmatmul.mubr.f32.gmra.mrb[0].mxu0 %v1303
        %v1518 = vpop.f32.mrb[0].mxu0
        %v1519 = vadd.f32 %v1218, %v1518
        %v1520 = vpop.f32.mrb[0].mxu0
        %1521 = vmatprep.mubr.f32.mxu0 0.0
        %1522 = vmatmul.mubr.f32.gmra.mrb[0].mxu0 %v1306
        %v1523 = vpop.f32.mrb[0].mxu0
        %v1524 = vadd.f32 %v1218, %v1523
        %v1525 = vpop.f32.mrb[0].mxu0
        %1526 = vmatprep.mubr.f32.mxu0 0.0
        %1527 = vmatmul.mubr.f32.gmra.mrb[0].mxu0 %v1309
        %v1528 = vpop.f32.mrb[0].mxu0
        %v1529 = vadd.f32 %v1218, %v1528
        %v1530 = vpop.f32.mrb[0].mxu0
        %1531 = vmatprep.mubr.f32.mxu0 0.0
        %1532 = vmatmul.mubr.f32.gmra.mrb[0].mxu0 %v1312
        %v1533 = vpop.f32.mrb[0].mxu0
        %v1534 = vadd.f32 %v1218, %v1533
        %v1535 = vpop.f32.mrb[0].mxu0
        %1536 = vmatprep.mubr.f32.mxu0 0.0
        %1537 = vmatmul.mubr.f32.gmra.mrb[0].mxu0 %v1315
        %v1538 = vpop.f32.mrb[0].mxu0
        %v1539 = vadd.f32 %v1218, %v1538
        %v1540 = vpop.f32.mrb[0].mxu0
        %1541 = vdwg.mxu0
        %v1542 = vtanh.pop %v1384
        %v1543 = vtanh.pop %v1389
        %v1544 = vtanh.pop %v1394
        %v1545 = vtanh.pop %v1399
        %v1546 = vtanh.pop %v1404
        %v1547 = vtanh.pop %v1409
        %v1548 = vtanh.pop %v1414
        %v1549 = vtanh.pop %v1419
        %v1550 = vtanh.pop %v1424
        %v1551 = vtanh.pop %v1429
        %v1552 = vtanh.pop %v1434
        %v1553 = vtanh.pop %v1439
        %v1554 = vtanh.pop %v1444
        %v1555 = vtanh.pop %v1449
        %v1556 = vtanh.pop %v1454
        %v1557 = vtanh.pop %v1459
        %v1558 = vtanh.pop %v1464
        %v1559 = vtanh.pop %v1469
        %v1560 = vtanh.pop %v1474
        %v1561 = vtanh.pop %v1479
        %v1562 = vtanh.pop %v1484
        %v1563 = vtanh.pop %v1489
        %v1564 = vtanh.pop %v1494
        %v1565 = vtanh.pop %v1499
        %v1566 = vtanh.pop %v1504
        %v1567 = vtanh.pop %v1509
        %v1568 = vtanh.pop %v1514
        %v1569 = vtanh.pop %v1519
        %v1570 = vtanh.pop %v1524
        %v1571 = vtanh.pop %v1529
        %v1572 = vtanh.pop %v1534
        %v1573 = vtanh.pop %v1539
        %v1575 = vsel %vm1220, %v1176, 0
        %v1578 = vsel %vm1220, %v1177, 0
        %v1581 = vsel %vm1220, %v1178, 0
        %v1584 = vsel %vm1220, %v1179, 0
        %v1587 = vsel %vm1220, %v1180, 0
        %v1590 = vsel %vm1220, %v1181, 0
        %v1593 = vsel %vm1220, %v1182, 0
        %v1596 = vsel %vm1220, %v1183, 0
        %v1599 = vsel %vm1220, %v1184, 0
        %v1602 = vsel %vm1220, %v1185, 0
        %v1605 = vsel %vm1220, %v1186, 0
        %v1608 = vsel %vm1220, %v1187, 0
        %v1611 = vsel %vm1220, %v1188, 0
        %v1614 = vsel %vm1220, %v1189, 0
        %v1617 = vsel %vm1220, %v1190, 0
        %v1620 = vsel %vm1220, %v1191, 0
        %v1623 = vsel %vm1220, %v1192, 0
        %v1626 = vsel %vm1220, %v1193, 0
        %v1629 = vsel %vm1220, %v1194, 0
        %v1632 = vsel %vm1220, %v1195, 0
        %v1635 = vsel %vm1220, %v1196, 0
        %v1638 = vsel %vm1220, %v1197, 0
        %v1641 = vsel %vm1220, %v1198, 0
        %v1644 = vsel %vm1220, %v1199, 0
        %v1647 = vsel %vm1220, %v1200, 0
        %v1650 = vsel %vm1220, %v1201, 0
        %v1653 = vsel %vm1220, %v1202, 0
        %v1656 = vsel %vm1220, %v1203, 0
        %v1659 = vsel %vm1220, %v1204, 0
        %v1662 = vsel %vm1220, %v1205, 0
        %v1665 = vsel %vm1220, %v1206, 0
        %v1668 = vsel %vm1220, %v1207, 0
        %1670 = vmatprep.subr.mxu0 0.0
        %1671 = vmatpush1.msra.mxu0 %v1208
        %1672 = vmatprep.subr.mxu0 0.0
        %1673 = vmatpush1.msra.mxu0 %v1209
        %1674 = vmatprep.subr.mxu0 0.0
        %1675 = vmatpush1.msra.mxu0 %v1210
        %1676 = vmatprep.subr.mxu0 0.0
        %1677 = vmatpush1.msra.mxu0 %v1211
        %1678 = vmatprep.subr.mxu0 0.0
        %1679 = vmatpush1.msra.mxu0 0.0
        %1680 = vmatprep.subr.mxu0 0.0
        %1681 = vmatpush1.msra.mxu0 0.0
        %1682 = vmatprep.subr.mxu0 0.0
        %1683 = vmatpush1.msra.mxu0 0.0
        %1684 = vmatprep.subr.mxu0 0.0
        %1685 = vmatpush1.msra.mxu0 0.0
        %1686 = vmatprep.subr.mxu0 0.0
        %1687 = vmatpush1.msra.mxu0 0.0
        %1688 = vmatprep.subr.mxu0 0.0
        %1689 = vmatpush1.msra.mxu0 0.0
        %1690 = vmatprep.subr.mxu0 0.0
        %1691 = vmatpush1.msra.mxu0 0.0
        %1692 = vmatprep.subr.mxu0 0.0
        %1693 = vmatpush1.msra.mxu0 0.0
        %1694 = vmatprep.subr.mxu0 0.0
        %1695 = vmatpush1.msra.mxu0 0.0
        %1696 = vmatprep.subr.mxu0 0.0
        %1697 = vmatpush1.msra.mxu0 0.0
        %1698 = vmatprep.subr.mxu0 0.0
        %1699 = vmatpush1.msra.mxu0 0.0
        %1700 = vmatprep.subr.mxu0 0.0
        %1701 = vmatpush1.msra.mxu0 0.0
        %1702 = vmatprep.subr.mxu0 0.0
        %1703 = vmatpush1.msra.mxu0 0.0
        %1704 = vmatprep.subr.mxu0 0.0
        %1705 = vmatpush1.msra.mxu0 0.0
        %1706 = vmatprep.subr.mxu0 0.0
        %1707 = vmatpush1.msra.mxu0 0.0
        %1708 = vmatprep.subr.mxu0 0.0
        %1709 = vmatpush1.msra.mxu0 0.0
        %1710 = vmatprep.subr.mxu0 0.0
        %1711 = vmatpush1.msra.mxu0 0.0
        %1712 = vmatprep.subr.mxu0 0.0
        %1713 = vmatpush1.msra.mxu0 0.0
        %1714 = vmatprep.subr.mxu0 0.0
        %1715 = vmatpush1.msra.mxu0 0.0
        %1716 = vmatprep.subr.mxu0 0.0
        %1717 = vmatpush1.msra.mxu0 0.0
        %1718 = vmatprep.subr.mxu0 0.0
        %1719 = vmatpush1.msra.mxu0 0.0
        %1720 = vmatprep.subr.mxu0 0.0
        %1721 = vmatpush1.msra.mxu0 0.0
        %1722 = vmatprep.subr.mxu0 0.0
        %1723 = vmatpush1.msra.mxu0 0.0
        %1724 = vmatprep.subr.mxu0 0.0
        %1725 = vmatpush1.msra.mxu0 0.0
        %1726 = vmatprep.subr.mxu0 0.0
        %1727 = vmatpush1.msra.mxu0 0.0
        %1728 = vmatprep.subr.mxu0 0.0
        %1729 = vmatpush1.msra.mxu0 0.0
        %1730 = vmatprep.subr.mxu0 0.0
        %1731 = vmatpush1.msra.mxu0 0.0
        %1732 = vmatprep.subr.mxu0 0.0
        %1733 = vmatpush1.msra.mxu0 0.0
        %1734 = vmatprep.mubr.f32.mxu0 0.0
        %1735 = vmatmul.mubr.f32.gmra.mrb[0].mxu0 %v1575
        %v1736 = vpop.f32.mrb[0].mxu0
        %v1737 = vadd.f32 %v1218, %v1736
        %v1738 = vpop.f32.mrb[0].mxu0
        %1739 = vmatprep.mubr.f32.mxu0 0.0
        %1740 = vmatmul.mubr.f32.gmra.mrb[0].mxu0 %v1578
        %v1741 = vpop.f32.mrb[0].mxu0
        %v1742 = vadd.f32 %v1218, %v1741
        %v1743 = vpop.f32.mrb[0].mxu0
        %1744 = vmatprep.mubr.f32.mxu0 0.0
        %1745 = vmatmul.mubr.f32.gmra.mrb[0].mxu0 %v1581
        %v1746 = vpop.f32.mrb[0].mxu0
        %v1747 = vadd.f32 %v1218, %v1746
        %v1748 = vpop.f32.mrb[0].mxu0
        %1749 = vmatprep.mubr.f32.mxu0 0.0
        %1750 = vmatmul.mubr.f32.gmra.mrb[0].mxu0 %v1584
        %v1751 = vpop.f32.mrb[0].mxu0
        %v1752 = vadd.f32 %v1218, %v1751
        %v1753 = vpop.f32.mrb[0].mxu0
        %1754 = vmatprep.mubr.f32.mxu0 0.0
        %1755 = vmatmul.mubr.f32.gmra.mrb[0].mxu0 %v1587
        %v1756 = vpop.f32.mrb[0].mxu0
        %v1757 = vadd.f32 %v1218, %v1756
        %v1758 = vpop.f32.mrb[0].mxu0
        %1759 = vmatprep.mubr.f32.mxu0 0.0
        %1760 = vmatmul.mubr.f32.gmra.mrb[0].mxu0 %v1590
        %v1761 = vpop.f32.mrb[0].mxu0
        %v1762 = vadd.f32 %v1218, %v1761
        %v1763 = vpop.f32.mrb[0].mxu0
        %1764 = vmatprep.mubr.f32.mxu0 0.0
        %1765 = vmatmul.mubr.f32.gmra.mrb[0].mxu0 %v1593
        %v1766 = vpop.f32.mrb[0].mxu0
        %v1767 = vadd.f32 %v1218, %v1766
        %v1768 = vpop.f32.mrb[0].mxu0
        %1769 = vmatprep.mubr.f32.mxu0 0.0
        %1770 = vmatmul.mubr.f32.gmra.mrb[0].mxu0 %v1596
        %v1771 = vpop.f32.mrb[0].mxu0
        %v1772 = vadd.f32 %v1218, %v1771
        %v1773 = vpop.f32.mrb[0].mxu0
        %1774 = vmatprep.mubr.f32.mxu0 0.0
        %1775 = vmatmul.mubr.f32.gmra.mrb[0].mxu0 %v1599
        %v1776 = vpop.f32.mrb[0].mxu0
        %v1777 = vadd.f32 %v1218, %v1776
        %v1778 = vpop.f32.mrb[0].mxu0
        %1779 = vmatprep.mubr.f32.mxu0 0.0
        %1780 = vmatmul.mubr.f32.gmra.mrb[0].mxu0 %v1602
        %v1781 = vpop.f32.mrb[0].mxu0
        %v1782 = vadd.f32 %v1218, %v1781
        %v1783 = vpop.f32.mrb[0].mxu0
        %1784 = vmatprep.mubr.f32.mxu0 0.0
        %1785 = vmatmul.mubr.f32.gmra.mrb[0].mxu0 %v1605
        %v1786 = vpop.f32.mrb[0].mxu0
        %v1787 = vadd.f32 %v1218, %v1786
        %v1788 = vpop.f32.mrb[0].mxu0
        %1789 = vmatprep.mubr.f32.mxu0 0.0
        %1790 = vmatmul.mubr.f32.gmra.mrb[0].mxu0 %v1608
        %v1791 = vpop.f32.mrb[0].mxu0
        %v1792 = vadd.f32 %v1218, %v1791
        %v1793 = vpop.f32.mrb[0].mxu0
        %1794 = vmatprep.mubr.f32.mxu0 0.0
        %1795 = vmatmul.mubr.f32.gmra.mrb[0].mxu0 %v1611
        %v1796 = vpop.f32.mrb[0].mxu0
        %v1797 = vadd.f32 %v1218, %v1796
        %v1798 = vpop.f32.mrb[0].mxu0
        %1799 = vmatprep.mubr.f32.mxu0 0.0
        %1800 = vmatmul.mubr.f32.gmra.mrb[0].mxu0 %v1614
        %v1801 = vpop.f32.mrb[0].mxu0
        %v1802 = vadd.f32 %v1218, %v1801
        %v1803 = vpop.f32.mrb[0].mxu0
        %1804 = vmatprep.mubr.f32.mxu0 0.0
        %1805 = vmatmul.mubr.f32.gmra.mrb[0].mxu0 %v1617
        %v1806 = vpop.f32.mrb[0].mxu0
        %v1807 = vadd.f32 %v1218, %v1806
        %v1808 = vpop.f32.mrb[0].mxu0
        %1809 = vmatprep.mubr.f32.mxu0 0.0
        %1810 = vmatmul.mubr.f32.gmra.mrb[0].mxu0 %v1620
        %v1811 = vpop.f32.mrb[0].mxu0
        %v1812 = vadd.f32 %v1218, %v1811
        %v1813 = vpop.f32.mrb[0].mxu0
        %1814 = vmatprep.mubr.f32.mxu0 0.0
        %1815 = vmatmul.mubr.f32.gmra.mrb[0].mxu0 %v1623
        %v1816 = vpop.f32.mrb[0].mxu0
        %v1817 = vadd.f32 %v1218, %v1816
        %v1818 = vpop.f32.mrb[0].mxu0
        %1819 = vmatprep.mubr.f32.mxu0 0.0
        %1820 = vmatmul.mubr.f32.gmra.mrb[0].mxu0 %v1626
        %v1821 = vpop.f32.mrb[0].mxu0
        %v1822 = vadd.f32 %v1218, %v1821
        %v1823 = vpop.f32.mrb[0].mxu0
        %1824 = vmatprep.mubr.f32.mxu0 0.0
        %1825 = vmatmul.mubr.f32.gmra.mrb[0].mxu0 %v1629
        %v1826 = vpop.f32.mrb[0].mxu0
        %v1827 = vadd.f32 %v1218, %v1826
        %v1828 = vpop.f32.mrb[0].mxu0
        %1829 = vmatprep.mubr.f32.mxu0 0.0
        %1830 = vmatmul.mubr.f32.gmra.mrb[0].mxu0 %v1632
        %v1831 = vpop.f32.mrb[0].mxu0
        %v1832 = vadd.f32 %v1218, %v1831
        %v1833 = vpop.f32.mrb[0].mxu0
        %1834 = vmatprep.mubr.f32.mxu0 0.0
        %1835 = vmatmul.mubr.f32.gmra.mrb[0].mxu0 %v1635
        %v1836 = vpop.f32.mrb[0].mxu0
        %v1837 = vadd.f32 %v1218, %v1836
        %v1838 = vpop.f32.mrb[0].mxu0
        %1839 = vmatprep.mubr.f32.mxu0 0.0
        %1840 = vmatmul.mubr.f32.gmra.mrb[0].mxu0 %v1638
        %v1841 = vpop.f32.mrb[0].mxu0
        %v1842 = vadd.f32 %v1218, %v1841
        %v1843 = vpop.f32.mrb[0].mxu0
        %1844 = vmatprep.mubr.f32.mxu0 0.0
        %1845 = vmatmul.mubr.f32.gmra.mrb[0].mxu0 %v1641
        %v1846 = vpop.f32.mrb[0].mxu0
        %v1847 = vadd.f32 %v1218, %v1846
        %v1848 = vpop.f32.mrb[0].mxu0
        %1849 = vmatprep.mubr.f32.mxu0 0.0
        %1850 = vmatmul.mubr.f32.gmra.mrb[0].mxu0 %v1644
        %v1851 = vpop.f32.mrb[0].mxu0
        %v1852 = vadd.f32 %v1218, %v1851
        %v1853 = vpop.f32.mrb[0].mxu0
        %1854 = vmatprep.mubr.f32.mxu0 0.0
        %1855 = vmatmul.mubr.f32.gmra.mrb[0].mxu0 %v1647
        %v1856 = vpop.f32.mrb[0].mxu0
        %v1857 = vadd.f32 %v1218, %v1856
        %v1858 = vpop.f32.mrb[0].mxu0
        %1859 = vmatprep.mubr.f32.mxu0 0.0
        %1860 = vmatmul.mubr.f32.gmra.mrb[0].mxu0 %v1650
        %v1861 = vpop.f32.mrb[0].mxu0
        %v1862 = vadd.f32 %v1218, %v1861
        %v1863 = vpop.f32.mrb[0].mxu0
        %1864 = vmatprep.mubr.f32.mxu0 0.0
        %1865 = vmatmul.mubr.f32.gmra.mrb[0].mxu0 %v1653
        %v1866 = vpop.f32.mrb[0].mxu0
        %v1867 = vadd.f32 %v1218, %v1866
        %v1868 = vpop.f32.mrb[0].mxu0
        %1869 = vmatprep.mubr.f32.mxu0 0.0
        %1870 = vmatmul.mubr.f32.gmra.mrb[0].mxu0 %v1656
        %v1871 = vpop.f32.mrb[0].mxu0
        %v1872 = vadd.f32 %v1218, %v1871
        %v1873 = vpop.f32.mrb[0].mxu0
        %1874 = vmatprep.mubr.f32.mxu0 0.0
        %1875 = vmatmul.mubr.f32.gmra.mrb[0].mxu0 %v1659
        %v1876 = vpop.f32.mrb[0].mxu0
        %v1877 = vadd.f32 %v1218, %v1876
        %v1878 = vpop.f32.mrb[0].mxu0
        %1879 = vmatprep.mubr.f32.mxu0 0.0
        %1880 = vmatmul.mubr.f32.gmra.mrb[0].mxu0 %v1662
        %v1881 = vpop.f32.mrb[0].mxu0
        %v1882 = vadd.f32 %v1218, %v1881
        %v1883 = vpop.f32.mrb[0].mxu0
        %1884 = vmatprep.mubr.f32.mxu0 0.0
        %1885 = vmatmul.mubr.f32.gmra.mrb[0].mxu0 %v1665
        %v1886 = vpop.f32.mrb[0].mxu0
        %v1887 = vadd.f32 %v1218, %v1886
        %v1888 = vpop.f32.mrb[0].mxu0
        %1889 = vmatprep.mubr.f32.mxu0 0.0
        %1890 = vmatmul.mubr.f32.gmra.mrb[0].mxu0 %v1668
        %v1891 = vpop.f32.mrb[0].mxu0
        %v1892 = vadd.f32 %v1218, %v1891
        %v1893 = vpop.f32.mrb[0].mxu0
        %1894 = vdwg.mxu0
        %v1895 = vtanh.pop %v1737
        %v1896 = vtanh.pop %v1742
        %v1897 = vtanh.pop %v1747
        %v1898 = vtanh.pop %v1752
        %v1899 = vtanh.pop %v1757
        %v1900 = vtanh.pop %v1762
        %v1901 = vtanh.pop %v1767
        %v1902 = vtanh.pop %v1772
        %v1903 = vtanh.pop %v1777
        %v1904 = vtanh.pop %v1782
        %v1905 = vtanh.pop %v1787
        %v1906 = vtanh.pop %v1792
        %v1907 = vtanh.pop %v1797
        %v1908 = vtanh.pop %v1802
        %v1909 = vtanh.pop %v1807
        %v1910 = vtanh.pop %v1812
        %v1911 = vtanh.pop %v1817
        %v1912 = vtanh.pop %v1822
        %v1913 = vtanh.pop %v1827
        %v1914 = vtanh.pop %v1832
        %v1915 = vtanh.pop %v1837
        %v1916 = vtanh.pop %v1842
        %v1917 = vtanh.pop %v1847
        %v1918 = vtanh.pop %v1852
        %v1919 = vtanh.pop %v1857
        %v1920 = vtanh.pop %v1862
        %v1921 = vtanh.pop %v1867
        %v1922 = vtanh.pop %v1872
        %v1923 = vtanh.pop %v1877
        %v1924 = vtanh.pop %v1882
        %v1925 = vtanh.pop %v1887
        %v1926 = vtanh.pop %v1892
        %v1928 = vlaneseq
        %v1929 = vshrl.u32 %v1928, 7
        %v1930 = vsub.s32 0, %v1929
        %v1931 = vrot.slane %v1213, %v1930
        %v1933 = vmul.f32 %v1542, %v1931
        %v1934 = vmul.f32 %v1543, %v1931
        %v1935 = vmul.f32 %v1544, %v1931
        %v1936 = vmul.f32 %v1545, %v1931
        %v1937 = vmul.f32 %v1546, %v1931
        %v1938 = vmul.f32 %v1547, %v1931
        %v1939 = vmul.f32 %v1548, %v1931
        %v1940 = vmul.f32 %v1549, %v1931
        %v1941 = vmul.f32 %v1550, %v1931
        %v1942 = vmul.f32 %v1551, %v1931
        %v1943 = vmul.f32 %v1552, %v1931
        %v1944 = vmul.f32 %v1553, %v1931
        %v1945 = vmul.f32 %v1554, %v1931
        %v1946 = vmul.f32 %v1555, %v1931
        %v1947 = vmul.f32 %v1556, %v1931
        %v1948 = vmul.f32 %v1557, %v1931
        %v1949 = vmul.f32 %v1558, %v1931
        %v1950 = vmul.f32 %v1559, %v1931
        %v1951 = vmul.f32 %v1560, %v1931
        %v1952 = vmul.f32 %v1561, %v1931
        %v1953 = vmul.f32 %v1562, %v1931
        %v1954 = vmul.f32 %v1563, %v1931
        %v1955 = vmul.f32 %v1564, %v1931
        %v1956 = vmul.f32 %v1565, %v1931
        %v1957 = vmul.f32 %v1566, %v1931
        %v1958 = vmul.f32 %v1567, %v1931
        %v1959 = vmul.f32 %v1568, %v1931
        %v1960 = vmul.f32 %v1569, %v1931
        %v1961 = vmul.f32 %v1570, %v1931
        %v1962 = vmul.f32 %v1571, %v1931
        %v1963 = vmul.f32 %v1572, %v1931
        %v1964 = vmul.f32 %v1573, %v1931
        %1965 = vadd.xlane.f32.xlu0 %v1933
        %v1966 = vpop.xlane.xlu0 %1965
        %1967 = vadd.xlane.f32.xlu0 %v1934
        %v1968 = vpop.xlane.xlu0 %1967
        %1969 = vadd.xlane.f32.xlu0 %v1935
        %v1970 = vpop.xlane.xlu0 %1969
        %1971 = vadd.xlane.f32.xlu0 %v1936
        %v1972 = vpop.xlane.xlu0 %1971
        %1973 = vadd.xlane.f32.xlu0 %v1937
        %v1974 = vpop.xlane.xlu0 %1973
        %1975 = vadd.xlane.f32.xlu0 %v1938
        %v1976 = vpop.xlane.xlu0 %1975
        %1977 = vadd.xlane.f32.xlu0 %v1939
        %v1978 = vpop.xlane.xlu0 %1977
        %1979 = vadd.xlane.f32.xlu0 %v1940
        %v1980 = vpop.xlane.xlu0 %1979
        %1981 = vadd.xlane.f32.xlu0 %v1941
        %v1982 = vpop.xlane.xlu0 %1981
        %1983 = vadd.xlane.f32.xlu0 %v1942
        %v1984 = vpop.xlane.xlu0 %1983
        %1985 = vadd.xlane.f32.xlu0 %v1943
        %v1986 = vpop.xlane.xlu0 %1985
        %1987 = vadd.xlane.f32.xlu0 %v1944
        %v1988 = vpop.xlane.xlu0 %1987
        %1989 = vadd.xlane.f32.xlu0 %v1945
        %v1990 = vpop.xlane.xlu0 %1989
        %1991 = vadd.xlane.f32.xlu0 %v1946
        %v1992 = vpop.xlane.xlu0 %1991
        %1993 = vadd.xlane.f32.xlu0 %v1947
        %v1994 = vpop.xlane.xlu0 %1993
        %1995 = vadd.xlane.f32.xlu0 %v1948
        %v1996 = vpop.xlane.xlu0 %1995
        %1997 = vadd.xlane.f32.xlu0 %v1949
        %v1998 = vpop.xlane.xlu0 %1997
        %1999 = vadd.xlane.f32.xlu0 %v1950
        %v2000 = vpop.xlane.xlu0 %1999
        %2001 = vadd.xlane.f32.xlu0 %v1951
        %v2002 = vpop.xlane.xlu0 %2001
        %2003 = vadd.xlane.f32.xlu0 %v1952
        %v2004 = vpop.xlane.xlu0 %2003
        %2005 = vadd.xlane.f32.xlu0 %v1953
        %v2006 = vpop.xlane.xlu0 %2005
        %2007 = vadd.xlane.f32.xlu0 %v1954
        %v2008 = vpop.xlane.xlu0 %2007
        %2009 = vadd.xlane.f32.xlu0 %v1955
        %v2010 = vpop.xlane.xlu0 %2009
        %2011 = vadd.xlane.f32.xlu0 %v1956
        %v2012 = vpop.xlane.xlu0 %2011
        %2013 = vadd.xlane.f32.xlu0 %v1957
        %v2014 = vpop.xlane.xlu0 %2013
        %2015 = vadd.xlane.f32.xlu0 %v1958
        %v2016 = vpop.xlane.xlu0 %2015
        %2017 = vadd.xlane.f32.xlu0 %v1959
        %v2018 = vpop.xlane.xlu0 %2017
        %2019 = vadd.xlane.f32.xlu0 %v1960
        %v2020 = vpop.xlane.xlu0 %2019
        %2021 = vadd.xlane.f32.xlu0 %v1961
        %v2022 = vpop.xlane.xlu0 %2021
        %2023 = vadd.xlane.f32.xlu0 %v1962
        %v2024 = vpop.xlane.xlu0 %2023
        %2025 = vadd.xlane.f32.xlu0 %v1963
        %v2026 = vpop.xlane.xlu0 %2025
        %2027 = vadd.xlane.f32.xlu0 %v1964
        %v2028 = vpop.xlane.xlu0 %2027
        %v2029 = vmul.f32 %v1895, %v1931
        %v2030 = vmul.f32 %v1896, %v1931
        %v2031 = vmul.f32 %v1897, %v1931
        %v2032 = vmul.f32 %v1898, %v1931
        %v2033 = vmul.f32 %v1899, %v1931
        %v2034 = vmul.f32 %v1900, %v1931
        %v2035 = vmul.f32 %v1901, %v1931
        %v2036 = vmul.f32 %v1902, %v1931
        %v2037 = vmul.f32 %v1903, %v1931
        %v2038 = vmul.f32 %v1904, %v1931
        %v2039 = vmul.f32 %v1905, %v1931
        %v2040 = vmul.f32 %v1906, %v1931
        %v2041 = vmul.f32 %v1907, %v1931
        %v2042 = vmul.f32 %v1908, %v1931
        %v2043 = vmul.f32 %v1909, %v1931
        %v2044 = vmul.f32 %v1910, %v1931
        %v2045 = vmul.f32 %v1911, %v1931
        %v2046 = vmul.f32 %v1912, %v1931
        %v2047 = vmul.f32 %v1913, %v1931
        %v2048 = vmul.f32 %v1914, %v1931
        %v2049 = vmul.f32 %v1915, %v1931
        %v2050 = vmul.f32 %v1916, %v1931
        %v2051 = vmul.f32 %v1917, %v1931
        %v2052 = vmul.f32 %v1918, %v1931
        %v2053 = vmul.f32 %v1919, %v1931
        %v2054 = vmul.f32 %v1920, %v1931
        %v2055 = vmul.f32 %v1921, %v1931
        %v2056 = vmul.f32 %v1922, %v1931
        %v2057 = vmul.f32 %v1923, %v1931
        %v2058 = vmul.f32 %v1924, %v1931
        %v2059 = vmul.f32 %v1925, %v1931
        %v2060 = vmul.f32 %v1926, %v1931
        %2061 = vadd.xlane.f32.xlu0 %v2029
        %v2062 = vpop.xlane.xlu0 %2061
        %2063 = vadd.xlane.f32.xlu0 %v2030
        %v2064 = vpop.xlane.xlu0 %2063
        %2065 = vadd.xlane.f32.xlu0 %v2031
        %v2066 = vpop.xlane.xlu0 %2065
        %2067 = vadd.xlane.f32.xlu0 %v2032
        %v2068 = vpop.xlane.xlu0 %2067
        %2069 = vadd.xlane.f32.xlu0 %v2033
        %v2070 = vpop.xlane.xlu0 %2069
        %2071 = vadd.xlane.f32.xlu0 %v2034
        %v2072 = vpop.xlane.xlu0 %2071
        %2073 = vadd.xlane.f32.xlu0 %v2035
        %v2074 = vpop.xlane.xlu0 %2073
        %2075 = vadd.xlane.f32.xlu0 %v2036
        %v2076 = vpop.xlane.xlu0 %2075
        %2077 = vadd.xlane.f32.xlu0 %v2037
        %v2078 = vpop.xlane.xlu0 %2077
        %2079 = vadd.xlane.f32.xlu0 %v2038
        %v2080 = vpop.xlane.xlu0 %2079
        %2081 = vadd.xlane.f32.xlu0 %v2039
        %v2082 = vpop.xlane.xlu0 %2081
        %2083 = vadd.xlane.f32.xlu0 %v2040
        %v2084 = vpop.xlane.xlu0 %2083
        %2085 = vadd.xlane.f32.xlu0 %v2041
        %v2086 = vpop.xlane.xlu0 %2085
        %2087 = vadd.xlane.f32.xlu0 %v2042
        %v2088 = vpop.xlane.xlu0 %2087
        %2089 = vadd.xlane.f32.xlu0 %v2043
        %v2090 = vpop.xlane.xlu0 %2089
        %2091 = vadd.xlane.f32.xlu0 %v2044
        %v2092 = vpop.xlane.xlu0 %2091
        %2093 = vadd.xlane.f32.xlu0 %v2045
        %v2094 = vpop.xlane.xlu0 %2093
        %2095 = vadd.xlane.f32.xlu0 %v2046
        %v2096 = vpop.xlane.xlu0 %2095
        %2097 = vadd.xlane.f32.xlu0 %v2047
        %v2098 = vpop.xlane.xlu0 %2097
        %2099 = vadd.xlane.f32.xlu0 %v2048
        %v2100 = vpop.xlane.xlu0 %2099
        %2101 = vadd.xlane.f32.xlu0 %v2049
        %v2102 = vpop.xlane.xlu0 %2101
        %2103 = vadd.xlane.f32.xlu0 %v2050
        %v2104 = vpop.xlane.xlu0 %2103
        %2105 = vadd.xlane.f32.xlu0 %v2051
        %v2106 = vpop.xlane.xlu0 %2105
        %2107 = vadd.xlane.f32.xlu0 %v2052
        %v2108 = vpop.xlane.xlu0 %2107
        %2109 = vadd.xlane.f32.xlu0 %v2053
        %v2110 = vpop.xlane.xlu0 %2109
        %2111 = vadd.xlane.f32.xlu0 %v2054
        %v2112 = vpop.xlane.xlu0 %2111
        %2113 = vadd.xlane.f32.xlu0 %v2055
        %v2114 = vpop.xlane.xlu0 %2113
        %2115 = vadd.xlane.f32.xlu0 %v2056
        %v2116 = vpop.xlane.xlu0 %2115
        %2117 = vadd.xlane.f32.xlu0 %v2057
        %v2118 = vpop.xlane.xlu0 %2117
        %2119 = vadd.xlane.f32.xlu0 %v2058
        %v2120 = vpop.xlane.xlu0 %2119
        %2121 = vadd.xlane.f32.xlu0 %v2059
        %v2122 = vpop.xlane.xlu0 %2121
        %2123 = vadd.xlane.f32.xlu0 %v2060
        %v2124 = vpop.xlane.xlu0 %2123
        %v2125 = vmax.f32 %v1966, %v2062
        %v2126 = vmax.f32 %v1968, %v2064
        %v2127 = vmax.f32 %v1970, %v2066
        %v2128 = vmax.f32 %v1972, %v2068
        %v2129 = vmax.f32 %v1974, %v2070
        %v2130 = vmax.f32 %v1976, %v2072
        %v2131 = vmax.f32 %v1978, %v2074
        %v2132 = vmax.f32 %v1980, %v2076
        %v2133 = vmax.f32 %v1982, %v2078
        %v2134 = vmax.f32 %v1984, %v2080
        %v2135 = vmax.f32 %v1986, %v2082
        %v2136 = vmax.f32 %v1988, %v2084
        %v2137 = vmax.f32 %v1990, %v2086
        %v2138 = vmax.f32 %v1992, %v2088
        %v2139 = vmax.f32 %v1994, %v2090
        %v2140 = vmax.f32 %v1996, %v2092
        %v2141 = vmax.f32 %v1998, %v2094
        %v2142 = vmax.f32 %v2000, %v2096
        %v2143 = vmax.f32 %v2002, %v2098
        %v2144 = vmax.f32 %v2004, %v2100
        %v2145 = vmax.f32 %v2006, %v2102
        %v2146 = vmax.f32 %v2008, %v2104
        %v2147 = vmax.f32 %v2010, %v2106
        %v2148 = vmax.f32 %v2012, %v2108
        %v2149 = vmax.f32 %v2014, %v2110
        %v2150 = vmax.f32 %v2016, %v2112
        %v2151 = vmax.f32 %v2018, %v2114
        %v2152 = vmax.f32 %v2020, %v2116
        %v2153 = vmax.f32 %v2022, %v2118
        %v2154 = vmax.f32 %v2024, %v2120
        %v2155 = vmax.f32 %v2026, %v2122
        %v2156 = vmax.f32 %v2028, %v2124
        %v2157 = vsub.f32 %v1966, %v2125
        %v2158 = vsub.f32 %v1968, %v2126
        %v2159 = vsub.f32 %v1970, %v2127
        %v2160 = vsub.f32 %v1972, %v2128
        %v2161 = vsub.f32 %v1974, %v2129
        %v2162 = vsub.f32 %v1976, %v2130
        %v2163 = vsub.f32 %v1978, %v2131
        %v2164 = vsub.f32 %v1980, %v2132
        %v2165 = vsub.f32 %v1982, %v2133
        %v2166 = vsub.f32 %v1984, %v2134
        %v2167 = vsub.f32 %v1986, %v2135
        %v2168 = vsub.f32 %v1988, %v2136
        %v2169 = vsub.f32 %v1990, %v2137
        %v2170 = vsub.f32 %v1992, %v2138
        %v2171 = vsub.f32 %v1994, %v2139
        %v2172 = vsub.f32 %v1996, %v2140
        %v2173 = vsub.f32 %v1998, %v2141
        %v2174 = vsub.f32 %v2000, %v2142
        %v2175 = vsub.f32 %v2002, %v2143
        %v2176 = vsub.f32 %v2004, %v2144
        %v2177 = vsub.f32 %v2006, %v2145
        %v2178 = vsub.f32 %v2008, %v2146
        %v2179 = vsub.f32 %v2010, %v2147
        %v2180 = vsub.f32 %v2012, %v2148
        %v2181 = vsub.f32 %v2014, %v2149
        %v2182 = vsub.f32 %v2016, %v2150
        %v2183 = vsub.f32 %v2018, %v2151
        %v2184 = vsub.f32 %v2020, %v2152
        %v2185 = vsub.f32 %v2022, %v2153
        %v2186 = vsub.f32 %v2024, %v2154
        %v2187 = vsub.f32 %v2026, %v2155
        %v2188 = vsub.f32 %v2028, %v2156
        %v2189 = vmul.f32 %v2157, 1.442695
        %v2190 = vpow.pop %v2189
        %v2191 = vmul.f32 %v2158, 1.442695
        %v2192 = vpow.pop %v2191
        %v2193 = vmul.f32 %v2159, 1.442695
        %v2194 = vpow.pop %v2193
        %v2195 = vmul.f32 %v2160, 1.442695
        %v2196 = vpow.pop %v2195
        %v2197 = vmul.f32 %v2161, 1.442695
        %v2198 = vpow.pop %v2197
        %v2199 = vmul.f32 %v2162, 1.442695
        %v2200 = vpow.pop %v2199
        %v2201 = vmul.f32 %v2163, 1.442695
        %v2202 = vpow.pop %v2201
        %v2203 = vmul.f32 %v2164, 1.442695
        %v2204 = vpow.pop %v2203
        %v2205 = vmul.f32 %v2165, 1.442695
        %v2206 = vpow.pop %v2205
        %v2207 = vmul.f32 %v2166, 1.442695
        %v2208 = vpow.pop %v2207
        %v2209 = vmul.f32 %v2167, 1.442695
        %v2210 = vpow.pop %v2209
        %v2211 = vmul.f32 %v2168, 1.442695
        %v2212 = vpow.pop %v2211
        %v2213 = vmul.f32 %v2169, 1.442695
        %v2214 = vpow.pop %v2213
        %v2215 = vmul.f32 %v2170, 1.442695
        %v2216 = vpow.pop %v2215
        %v2217 = vmul.f32 %v2171, 1.442695
        %v2218 = vpow.pop %v2217
        %v2219 = vmul.f32 %v2172, 1.442695
        %v2220 = vpow.pop %v2219
        %v2221 = vmul.f32 %v2173, 1.442695
        %v2222 = vpow.pop %v2221
        %v2223 = vmul.f32 %v2174, 1.442695
        %v2224 = vpow.pop %v2223
        %v2225 = vmul.f32 %v2175, 1.442695
        %v2226 = vpow.pop %v2225
        %v2227 = vmul.f32 %v2176, 1.442695
        %v2228 = vpow.pop %v2227
        %v2229 = vmul.f32 %v2177, 1.442695
        %v2230 = vpow.pop %v2229
        %v2231 = vmul.f32 %v2178, 1.442695
        %v2232 = vpow.pop %v2231
        %v2233 = vmul.f32 %v2179, 1.442695
        %v2234 = vpow.pop %v2233
        %v2235 = vmul.f32 %v2180, 1.442695
        %v2236 = vpow.pop %v2235
        %v2237 = vmul.f32 %v2181, 1.442695
        %v2238 = vpow.pop %v2237
        %v2239 = vmul.f32 %v2182, 1.442695
        %v2240 = vpow.pop %v2239
        %v2241 = vmul.f32 %v2183, 1.442695
        %v2242 = vpow.pop %v2241
        %v2243 = vmul.f32 %v2184, 1.442695
        %v2244 = vpow.pop %v2243
        %v2245 = vmul.f32 %v2185, 1.442695
        %v2246 = vpow.pop %v2245
        %v2247 = vmul.f32 %v2186, 1.442695
        %v2248 = vpow.pop %v2247
        %v2249 = vmul.f32 %v2187, 1.442695
        %v2250 = vpow.pop %v2249
        %v2251 = vmul.f32 %v2188, 1.442695
        %v2252 = vpow.pop %v2251
        %v2253 = vsub.f32 %v2062, %v2125
        %v2254 = vsub.f32 %v2064, %v2126
        %v2255 = vsub.f32 %v2066, %v2127
        %v2256 = vsub.f32 %v2068, %v2128
        %v2257 = vsub.f32 %v2070, %v2129
        %v2258 = vsub.f32 %v2072, %v2130
        %v2259 = vsub.f32 %v2074, %v2131
        %v2260 = vsub.f32 %v2076, %v2132
        %v2261 = vsub.f32 %v2078, %v2133
        %v2262 = vsub.f32 %v2080, %v2134
        %v2263 = vsub.f32 %v2082, %v2135
        %v2264 = vsub.f32 %v2084, %v2136
        %v2265 = vsub.f32 %v2086, %v2137
        %v2266 = vsub.f32 %v2088, %v2138
        %v2267 = vsub.f32 %v2090, %v2139
        %v2268 = vsub.f32 %v2092, %v2140
        %v2269 = vsub.f32 %v2094, %v2141
        %v2270 = vsub.f32 %v2096, %v2142
        %v2271 = vsub.f32 %v2098, %v2143
        %v2272 = vsub.f32 %v2100, %v2144
        %v2273 = vsub.f32 %v2102, %v2145
        %v2274 = vsub.f32 %v2104, %v2146
        %v2275 = vsub.f32 %v2106, %v2147
        %v2276 = vsub.f32 %v2108, %v2148
        %v2277 = vsub.f32 %v2110, %v2149
        %v2278 = vsub.f32 %v2112, %v2150
        %v2279 = vsub.f32 %v2114, %v2151
        %v2280 = vsub.f32 %v2116, %v2152
        %v2281 = vsub.f32 %v2118, %v2153
        %v2282 = vsub.f32 %v2120, %v2154
        %v2283 = vsub.f32 %v2122, %v2155
        %v2284 = vsub.f32 %v2124, %v2156
        %v2285 = vmul.f32 %v2253, 1.442695
        %v2286 = vpow.pop %v2285
        %v2287 = vmul.f32 %v2254, 1.442695
        %v2288 = vpow.pop %v2287
        %v2289 = vmul.f32 %v2255, 1.442695
        %v2290 = vpow.pop %v2289
        %v2291 = vmul.f32 %v2256, 1.442695
        %v2292 = vpow.pop %v2291
        %v2293 = vmul.f32 %v2257, 1.442695
        %v2294 = vpow.pop %v2293
        %v2295 = vmul.f32 %v2258, 1.442695
        %v2296 = vpow.pop %v2295
        %v2297 = vmul.f32 %v2259, 1.442695
        %v2298 = vpow.pop %v2297
        %v2299 = vmul.f32 %v2260, 1.442695
        %v2300 = vpow.pop %v2299
        %v2301 = vmul.f32 %v2261, 1.442695
        %v2302 = vpow.pop %v2301
        %v2303 = vmul.f32 %v2262, 1.442695
        %v2304 = vpow.pop %v2303
        %v2305 = vmul.f32 %v2263, 1.442695
        %v2306 = vpow.pop %v2305
        %v2307 = vmul.f32 %v2264, 1.442695
        %v2308 = vpow.pop %v2307
        %v2309 = vmul.f32 %v2265, 1.442695
        %v2310 = vpow.pop %v2309
        %v2311 = vmul.f32 %v2266, 1.442695
        %v2312 = vpow.pop %v2311
        %v2313 = vmul.f32 %v2267, 1.442695
        %v2314 = vpow.pop %v2313
        %v2315 = vmul.f32 %v2268, 1.442695
        %v2316 = vpow.pop %v2315
        %v2317 = vmul.f32 %v2269, 1.442695
        %v2318 = vpow.pop %v2317
        %v2319 = vmul.f32 %v2270, 1.442695
        %v2320 = vpow.pop %v2319
        %v2321 = vmul.f32 %v2271, 1.442695
        %v2322 = vpow.pop %v2321
        %v2323 = vmul.f32 %v2272, 1.442695
        %v2324 = vpow.pop %v2323
        %v2325 = vmul.f32 %v2273, 1.442695
        %v2326 = vpow.pop %v2325
        %v2327 = vmul.f32 %v2274, 1.442695
        %v2328 = vpow.pop %v2327
        %v2329 = vmul.f32 %v2275, 1.442695
        %v2330 = vpow.pop %v2329
        %v2331 = vmul.f32 %v2276, 1.442695
        %v2332 = vpow.pop %v2331
        %v2333 = vmul.f32 %v2277, 1.442695
        %v2334 = vpow.pop %v2333
        %v2335 = vmul.f32 %v2278, 1.442695
        %v2336 = vpow.pop %v2335
        %v2337 = vmul.f32 %v2279, 1.442695
        %v2338 = vpow.pop %v2337
        %v2339 = vmul.f32 %v2280, 1.442695
        %v2340 = vpow.pop %v2339
        %v2341 = vmul.f32 %v2281, 1.442695
        %v2342 = vpow.pop %v2341
        %v2343 = vmul.f32 %v2282, 1.442695
        %v2344 = vpow.pop %v2343
        %v2345 = vmul.f32 %v2283, 1.442695
        %v2346 = vpow.pop %v2345
        %v2347 = vmul.f32 %v2284, 1.442695
        %v2348 = vpow.pop %v2347
        %v2349 = vadd.f32 %v2190, %v2286
        %v2350 = vadd.f32 %v2192, %v2288
        %v2351 = vadd.f32 %v2194, %v2290
        %v2352 = vadd.f32 %v2196, %v2292
        %v2353 = vadd.f32 %v2198, %v2294
        %v2354 = vadd.f32 %v2200, %v2296
        %v2355 = vadd.f32 %v2202, %v2298
        %v2356 = vadd.f32 %v2204, %v2300
        %v2357 = vadd.f32 %v2206, %v2302
        %v2358 = vadd.f32 %v2208, %v2304
        %v2359 = vadd.f32 %v2210, %v2306
        %v2360 = vadd.f32 %v2212, %v2308
        %v2361 = vadd.f32 %v2214, %v2310
        %v2362 = vadd.f32 %v2216, %v2312
        %v2363 = vadd.f32 %v2218, %v2314
        %v2364 = vadd.f32 %v2220, %v2316
        %v2365 = vadd.f32 %v2222, %v2318
        %v2366 = vadd.f32 %v2224, %v2320
        %v2367 = vadd.f32 %v2226, %v2322
        %v2368 = vadd.f32 %v2228, %v2324
        %v2369 = vadd.f32 %v2230, %v2326
        %v2370 = vadd.f32 %v2232, %v2328
        %v2371 = vadd.f32 %v2234, %v2330
        %v2372 = vadd.f32 %v2236, %v2332
        %v2373 = vadd.f32 %v2238, %v2334
        %v2374 = vadd.f32 %v2240, %v2336
        %v2375 = vadd.f32 %v2242, %v2338
        %v2376 = vadd.f32 %v2244, %v2340
        %v2377 = vadd.f32 %v2246, %v2342
        %v2378 = vadd.f32 %v2248, %v2344
        %v2379 = vadd.f32 %v2250, %v2346
        %v2380 = vadd.f32 %v2252, %v2348
        %v2381 = vrcp.pop %v2349
        %v2382 = vrcp.pop %v2350
        %v2383 = vrcp.pop %v2351
        %v2384 = vrcp.pop %v2352
        %v2385 = vrcp.pop %v2353
        %v2386 = vrcp.pop %v2354
        %v2387 = vrcp.pop %v2355
        %v2388 = vrcp.pop %v2356
        %v2389 = vrcp.pop %v2357
        %v2390 = vrcp.pop %v2358
        %v2391 = vrcp.pop %v2359
        %v2392 = vrcp.pop %v2360
        %v2393 = vrcp.pop %v2361
        %v2394 = vrcp.pop %v2362
        %v2395 = vrcp.pop %v2363
        %v2396 = vrcp.pop %v2364
        %v2397 = vrcp.pop %v2365
        %v2398 = vrcp.pop %v2366
        %v2399 = vrcp.pop %v2367
        %v2400 = vrcp.pop %v2368
        %v2401 = vrcp.pop %v2369
        %v2402 = vrcp.pop %v2370
        %v2403 = vrcp.pop %v2371
        %v2404 = vrcp.pop %v2372
        %v2405 = vrcp.pop %v2373
        %v2406 = vrcp.pop %v2374
        %v2407 = vrcp.pop %v2375
        %v2408 = vrcp.pop %v2376
        %v2409 = vrcp.pop %v2377
        %v2410 = vrcp.pop %v2378
        %v2411 = vrcp.pop %v2379
        %v2412 = vrcp.pop %v2380
        %v2413 = vmul.f32 %v2190, %v2381
        %v2414 = vmul.f32 %v2192, %v2382
        %v2415 = vmul.f32 %v2194, %v2383
        %v2416 = vmul.f32 %v2196, %v2384
        %v2417 = vmul.f32 %v2198, %v2385
        %v2418 = vmul.f32 %v2200, %v2386
        %v2419 = vmul.f32 %v2202, %v2387
        %v2420 = vmul.f32 %v2204, %v2388
        %v2421 = vmul.f32 %v2206, %v2389
        %v2422 = vmul.f32 %v2208, %v2390
        %v2423 = vmul.f32 %v2210, %v2391
        %v2424 = vmul.f32 %v2212, %v2392
        %v2425 = vmul.f32 %v2214, %v2393
        %v2426 = vmul.f32 %v2216, %v2394
        %v2427 = vmul.f32 %v2218, %v2395
        %v2428 = vmul.f32 %v2220, %v2396
        %v2429 = vmul.f32 %v2222, %v2397
        %v2430 = vmul.f32 %v2224, %v2398
        %v2431 = vmul.f32 %v2226, %v2399
        %v2432 = vmul.f32 %v2228, %v2400
        %v2433 = vmul.f32 %v2230, %v2401
        %v2434 = vmul.f32 %v2232, %v2402
        %v2435 = vmul.f32 %v2234, %v2403
        %v2436 = vmul.f32 %v2236, %v2404
        %v2437 = vmul.f32 %v2238, %v2405
        %v2438 = vmul.f32 %v2240, %v2406
        %v2439 = vmul.f32 %v2242, %v2407
        %v2440 = vmul.f32 %v2244, %v2408
        %v2441 = vmul.f32 %v2246, %v2409
        %v2442 = vmul.f32 %v2248, %v2410
        %v2443 = vmul.f32 %v2250, %v2411
        %v2444 = vmul.f32 %v2252, %v2412
        %v2445 = vmul.f32 %v2286, %v2381
        %v2446 = vmul.f32 %v2288, %v2382
        %v2447 = vmul.f32 %v2290, %v2383
        %v2448 = vmul.f32 %v2292, %v2384
        %v2449 = vmul.f32 %v2294, %v2385
        %v2450 = vmul.f32 %v2296, %v2386
        %v2451 = vmul.f32 %v2298, %v2387
        %v2452 = vmul.f32 %v2300, %v2388
        %v2453 = vmul.f32 %v2302, %v2389
        %v2454 = vmul.f32 %v2304, %v2390
        %v2455 = vmul.f32 %v2306, %v2391
        %v2456 = vmul.f32 %v2308, %v2392
        %v2457 = vmul.f32 %v2310, %v2393
        %v2458 = vmul.f32 %v2312, %v2394
        %v2459 = vmul.f32 %v2314, %v2395
        %v2460 = vmul.f32 %v2316, %v2396
        %v2461 = vmul.f32 %v2318, %v2397
        %v2462 = vmul.f32 %v2320, %v2398
        %v2463 = vmul.f32 %v2322, %v2399
        %v2464 = vmul.f32 %v2324, %v2400
        %v2465 = vmul.f32 %v2326, %v2401
        %v2466 = vmul.f32 %v2328, %v2402
        %v2467 = vmul.f32 %v2330, %v2403
        %v2468 = vmul.f32 %v2332, %v2404
        %v2469 = vmul.f32 %v2334, %v2405
        %v2470 = vmul.f32 %v2336, %v2406
        %v2471 = vmul.f32 %v2338, %v2407
        %v2472 = vmul.f32 %v2340, %v2408
        %v2473 = vmul.f32 %v2342, %v2409
        %v2474 = vmul.f32 %v2344, %v2410
        %v2475 = vmul.f32 %v2346, %v2411
        %v2476 = vmul.f32 %v2348, %v2412
        %v2477 = vmul.f32 %v2413, %v777
        %v2478 = vmul.f32 %v2414, %v778
        %v2479 = vmul.f32 %v2415, %v779
        %v2480 = vmul.f32 %v2416, %v780
        %v2481 = vmul.f32 %v2417, %v781
        %v2482 = vmul.f32 %v2418, %v782
        %v2483 = vmul.f32 %v2419, %v783
        %v2484 = vmul.f32 %v2420, %v784
        %v2485 = vmul.f32 %v2421, %v785
        %v2486 = vmul.f32 %v2422, %v786
        %v2487 = vmul.f32 %v2423, %v787
        %v2488 = vmul.f32 %v2424, %v788
        %v2489 = vmul.f32 %v2425, %v789
        %v2490 = vmul.f32 %v2426, %v790
        %v2491 = vmul.f32 %v2427, %v791
        %v2492 = vmul.f32 %v2428, %v792
        %v2493 = vmul.f32 %v2429, %v793
        %v2494 = vmul.f32 %v2430, %v794
        %v2495 = vmul.f32 %v2431, %v795
        %v2496 = vmul.f32 %v2432, %v796
        %v2497 = vmul.f32 %v2433, %v797
        %v2498 = vmul.f32 %v2434, %v798
        %v2499 = vmul.f32 %v2435, %v799
        %v2500 = vmul.f32 %v2436, %v800
        %v2501 = vmul.f32 %v2437, %v801
        %v2502 = vmul.f32 %v2438, %v802
        %v2503 = vmul.f32 %v2439, %v803
        %v2504 = vmul.f32 %v2440, %v804
        %v2505 = vmul.f32 %v2441, %v805
        %v2506 = vmul.f32 %v2442, %v806
        %v2507 = vmul.f32 %v2443, %v807
        %v2508 = vmul.f32 %v2444, %v808
        %v2509 = vmul.f32 %v2445, %v1176
        %v2510 = vmul.f32 %v2446, %v1177
        %v2511 = vmul.f32 %v2447, %v1178
        %v2512 = vmul.f32 %v2448, %v1179
        %v2513 = vmul.f32 %v2449, %v1180
        %v2514 = vmul.f32 %v2450, %v1181
        %v2515 = vmul.f32 %v2451, %v1182
        %v2516 = vmul.f32 %v2452, %v1183
        %v2517 = vmul.f32 %v2453, %v1184
        %v2518 = vmul.f32 %v2454, %v1185
        %v2519 = vmul.f32 %v2455, %v1186
        %v2520 = vmul.f32 %v2456, %v1187
        %v2521 = vmul.f32 %v2457, %v1188
        %v2522 = vmul.f32 %v2458, %v1189
        %v2523 = vmul.f32 %v2459, %v1190
        %v2524 = vmul.f32 %v2460, %v1191
        %v2525 = vmul.f32 %v2461, %v1192
        %v2526 = vmul.f32 %v2462, %v1193
        %v2527 = vmul.f32 %v2463, %v1194
        %v2528 = vmul.f32 %v2464, %v1195
        %v2529 = vmul.f32 %v2465, %v1196
        %v2530 = vmul.f32 %v2466, %v1197
        %v2531 = vmul.f32 %v2467, %v1198
        %v2532 = vmul.f32 %v2468, %v1199
        %v2533 = vmul.f32 %v2469, %v1200
        %v2534 = vmul.f32 %v2470, %v1201
        %v2535 = vmul.f32 %v2471, %v1202
        %v2536 = vmul.f32 %v2472, %v1203
        %v2537 = vmul.f32 %v2473, %v1204
        %v2538 = vmul.f32 %v2474, %v1205
        %v2539 = vmul.f32 %v2475, %v1206
        %v2540 = vmul.f32 %v2476, %v1207
        %v2541 = vadd.f32 %v2477, %v2509
        %v2542 = vadd.f32 %v2478, %v2510
        %v2543 = vadd.f32 %v2479, %v2511
        %v2544 = vadd.f32 %v2480, %v2512
        %v2545 = vadd.f32 %v2481, %v2513
        %v2546 = vadd.f32 %v2482, %v2514
        %v2547 = vadd.f32 %v2483, %v2515
        %v2548 = vadd.f32 %v2484, %v2516
        %v2549 = vadd.f32 %v2485, %v2517
        %v2550 = vadd.f32 %v2486, %v2518
        %v2551 = vadd.f32 %v2487, %v2519
        %v2552 = vadd.f32 %v2488, %v2520
        %v2553 = vadd.f32 %v2489, %v2521
        %v2554 = vadd.f32 %v2490, %v2522
        %v2555 = vadd.f32 %v2491, %v2523
        %v2556 = vadd.f32 %v2492, %v2524
        %v2557 = vadd.f32 %v2493, %v2525
        %v2558 = vadd.f32 %v2494, %v2526
        %v2559 = vadd.f32 %v2495, %v2527
        %v2560 = vadd.f32 %v2496, %v2528
        %v2561 = vadd.f32 %v2497, %v2529
        %v2562 = vadd.f32 %v2498, %v2530
        %v2563 = vadd.f32 %v2499, %v2531
        %v2564 = vadd.f32 %v2500, %v2532
        %v2565 = vadd.f32 %v2501, %v2533
        %v2566 = vadd.f32 %v2502, %v2534
        %v2567 = vadd.f32 %v2503, %v2535
        %v2568 = vadd.f32 %v2504, %v2536
        %v2569 = vadd.f32 %v2505, %v2537
        %v2570 = vadd.f32 %v2506, %v2538
        %v2571 = vadd.f32 %v2507, %v2539
        %v2572 = vadd.f32 %v2508, %v2540
        %v2573 = vld [vmem:[%s9] sm:$0xff]
        %v2574 = vld [vmem:[%s9 + $0x8] sm:$0xff]
        %v2575 = vld [vmem:[%s9 + $0x10] sm:$0xff]
        %v2576 = vld [vmem:[%s9 + $0x18] sm:$0xff]
        %v2577 = vld [vmem:[%s10] sm:$0x1]
        %v2579 = vlaneseq
        %v2580 = vshrl.u32 %v2579, 7
        %v2581 = vsub.s32 0, %v2580
        %v2582 = vrot.slane %v2577, %v2581
        %v2585 = vsel %vm1220, %v2541, 0
        %v2588 = vsel %vm1220, %v2542, 0
        %v2591 = vsel %vm1220, %v2543, 0
        %v2594 = vsel %vm1220, %v2544, 0
        %v2597 = vsel %vm1220, %v2545, 0
        %v2600 = vsel %vm1220, %v2546, 0
        %v2603 = vsel %vm1220, %v2547, 0
        %v2606 = vsel %vm1220, %v2548, 0
        %v2609 = vsel %vm1220, %v2549, 0
        %v2612 = vsel %vm1220, %v2550, 0
        %v2615 = vsel %vm1220, %v2551, 0
        %v2618 = vsel %vm1220, %v2552, 0
        %v2621 = vsel %vm1220, %v2553, 0
        %v2624 = vsel %vm1220, %v2554, 0
        %v2627 = vsel %vm1220, %v2555, 0
        %v2630 = vsel %vm1220, %v2556, 0
        %v2633 = vsel %vm1220, %v2557, 0
        %v2636 = vsel %vm1220, %v2558, 0
        %v2639 = vsel %vm1220, %v2559, 0
        %v2642 = vsel %vm1220, %v2560, 0
        %v2645 = vsel %vm1220, %v2561, 0
        %v2648 = vsel %vm1220, %v2562, 0
        %v2651 = vsel %vm1220, %v2563, 0
        %v2654 = vsel %vm1220, %v2564, 0
        %v2657 = vsel %vm1220, %v2565, 0
        %v2660 = vsel %vm1220, %v2566, 0
        %v2663 = vsel %vm1220, %v2567, 0
        %v2666 = vsel %vm1220, %v2568, 0
        %v2669 = vsel %vm1220, %v2569, 0
        %v2672 = vsel %vm1220, %v2570, 0
        %v2675 = vsel %vm1220, %v2571, 0
        %v2678 = vsel %vm1220, %v2572, 0
        %2680 = vmatprep.subr.mxu0 0.0
        %2681 = vmatpush1.msra.mxu0 %v2573
        %2682 = vmatprep.subr.mxu0 0.0
        %2683 = vmatpush1.msra.mxu0 %v2574
        %2684 = vmatprep.subr.mxu0 0.0
        %2685 = vmatpush1.msra.mxu0 %v2575
        %2686 = vmatprep.subr.mxu0 0.0
        %2687 = vmatpush1.msra.mxu0 %v2576
        %2688 = vmatprep.subr.mxu0 0.0
        %2689 = vmatpush1.msra.mxu0 0.0
        %2690 = vmatprep.subr.mxu0 0.0
        %2691 = vmatpush1.msra.mxu0 0.0
        %2692 = vmatprep.subr.mxu0 0.0
        %2693 = vmatpush1.msra.mxu0 0.0
        %2694 = vmatprep.subr.mxu0 0.0
        %2695 = vmatpush1.msra.mxu0 0.0
        %2696 = vmatprep.subr.mxu0 0.0
        %2697 = vmatpush1.msra.mxu0 0.0
        %2698 = vmatprep.subr.mxu0 0.0
        %2699 = vmatpush1.msra.mxu0 0.0
        %2700 = vmatprep.subr.mxu0 0.0
        %2701 = vmatpush1.msra.mxu0 0.0
        %2702 = vmatprep.subr.mxu0 0.0
        %2703 = vmatpush1.msra.mxu0 0.0
        %2704 = vmatprep.subr.mxu0 0.0
        %2705 = vmatpush1.msra.mxu0 0.0
        %2706 = vmatprep.subr.mxu0 0.0
        %2707 = vmatpush1.msra.mxu0 0.0
        %2708 = vmatprep.subr.mxu0 0.0
        %2709 = vmatpush1.msra.mxu0 0.0
        %2710 = vmatprep.subr.mxu0 0.0
        %2711 = vmatpush1.msra.mxu0 0.0
        %2712 = vmatprep.subr.mxu0 0.0
        %2713 = vmatpush1.msra.mxu0 0.0
        %2714 = vmatprep.subr.mxu0 0.0
        %2715 = vmatpush1.msra.mxu0 0.0
        %2716 = vmatprep.subr.mxu0 0.0
        %2717 = vmatpush1.msra.mxu0 0.0
        %2718 = vmatprep.subr.mxu0 0.0
        %2719 = vmatpush1.msra.mxu0 0.0
        %2720 = vmatprep.subr.mxu0 0.0
        %2721 = vmatpush1.msra.mxu0 0.0
        %2722 = vmatprep.subr.mxu0 0.0
        %2723 = vmatpush1.msra.mxu0 0.0
        %2724 = vmatprep.subr.mxu0 0.0
        %2725 = vmatpush1.msra.mxu0 0.0
        %2726 = vmatprep.subr.mxu0 0.0
        %2727 = vmatpush1.msra.mxu0 0.0
        %2728 = vmatprep.subr.mxu0 0.0
        %2729 = vmatpush1.msra.mxu0 0.0
        %2730 = vmatprep.subr.mxu0 0.0
        %2731 = vmatpush1.msra.mxu0 0.0
        %2732 = vmatprep.subr.mxu0 0.0
        %2733 = vmatpush1.msra.mxu0 0.0
        %2734 = vmatprep.subr.mxu0 0.0
        %2735 = vmatpush1.msra.mxu0 0.0
        %2736 = vmatprep.subr.mxu0 0.0
        %2737 = vmatpush1.msra.mxu0 0.0
        %2738 = vmatprep.subr.mxu0 0.0
        %2739 = vmatpush1.msra.mxu0 0.0
        %2740 = vmatprep.subr.mxu0 0.0
        %2741 = vmatpush1.msra.mxu0 0.0
        %2742 = vmatprep.subr.mxu0 0.0
        %2743 = vmatpush1.msra.mxu0 0.0
        %2744 = vmatprep.mubr.f32.mxu0 0.0
        %2745 = vmatmul.mubr.f32.gmra.mrb[0].mxu0 %v2585
        %v2746 = vpop.f32.mrb[0].mxu0
        %v2747 = vadd.f32 %v2582, %v2746
        %v2748 = vpop.f32.mrb[0].mxu0
        %2749 = vmatprep.mubr.f32.mxu0 0.0
        %2750 = vmatmul.mubr.f32.gmra.mrb[0].mxu0 %v2588
        %v2751 = vpop.f32.mrb[0].mxu0
        %v2752 = vadd.f32 %v2582, %v2751
        %v2753 = vpop.f32.mrb[0].mxu0
        %2754 = vmatprep.mubr.f32.mxu0 0.0
        %2755 = vmatmul.mubr.f32.gmra.mrb[0].mxu0 %v2591
        %v2756 = vpop.f32.mrb[0].mxu0
        %v2757 = vadd.f32 %v2582, %v2756
        %v2758 = vpop.f32.mrb[0].mxu0
        %2759 = vmatprep.mubr.f32.mxu0 0.0
        %2760 = vmatmul.mubr.f32.gmra.mrb[0].mxu0 %v2594
        %v2761 = vpop.f32.mrb[0].mxu0
        %v2762 = vadd.f32 %v2582, %v2761
        %v2763 = vpop.f32.mrb[0].mxu0
        %2764 = vmatprep.mubr.f32.mxu0 0.0
        %2765 = vmatmul.mubr.f32.gmra.mrb[0].mxu0 %v2597
        %v2766 = vpop.f32.mrb[0].mxu0
        %v2767 = vadd.f32 %v2582, %v2766
        %v2768 = vpop.f32.mrb[0].mxu0
        %2769 = vmatprep.mubr.f32.mxu0 0.0
        %2770 = vmatmul.mubr.f32.gmra.mrb[0].mxu0 %v2600
        %v2771 = vpop.f32.mrb[0].mxu0
        %v2772 = vadd.f32 %v2582, %v2771
        %v2773 = vpop.f32.mrb[0].mxu0
        %2774 = vmatprep.mubr.f32.mxu0 0.0
        %2775 = vmatmul.mubr.f32.gmra.mrb[0].mxu0 %v2603
        %v2776 = vpop.f32.mrb[0].mxu0
        %v2777 = vadd.f32 %v2582, %v2776
        %v2778 = vpop.f32.mrb[0].mxu0
        %2779 = vmatprep.mubr.f32.mxu0 0.0
        %2780 = vmatmul.mubr.f32.gmra.mrb[0].mxu0 %v2606
        %v2781 = vpop.f32.mrb[0].mxu0
        %v2782 = vadd.f32 %v2582, %v2781
        %v2783 = vpop.f32.mrb[0].mxu0
        %2784 = vmatprep.mubr.f32.mxu0 0.0
        %2785 = vmatmul.mubr.f32.gmra.mrb[0].mxu0 %v2609
        %v2786 = vpop.f32.mrb[0].mxu0
        %v2787 = vadd.f32 %v2582, %v2786
        %v2788 = vpop.f32.mrb[0].mxu0
        %2789 = vmatprep.mubr.f32.mxu0 0.0
        %2790 = vmatmul.mubr.f32.gmra.mrb[0].mxu0 %v2612
        %v2791 = vpop.f32.mrb[0].mxu0
        %v2792 = vadd.f32 %v2582, %v2791
        %v2793 = vpop.f32.mrb[0].mxu0
        %2794 = vmatprep.mubr.f32.mxu0 0.0
        %2795 = vmatmul.mubr.f32.gmra.mrb[0].mxu0 %v2615
        %v2796 = vpop.f32.mrb[0].mxu0
        %v2797 = vadd.f32 %v2582, %v2796
        %v2798 = vpop.f32.mrb[0].mxu0
        %2799 = vmatprep.mubr.f32.mxu0 0.0
        %2800 = vmatmul.mubr.f32.gmra.mrb[0].mxu0 %v2618
        %v2801 = vpop.f32.mrb[0].mxu0
        %v2802 = vadd.f32 %v2582, %v2801
        %v2803 = vpop.f32.mrb[0].mxu0
        %2804 = vmatprep.mubr.f32.mxu0 0.0
        %2805 = vmatmul.mubr.f32.gmra.mrb[0].mxu0 %v2621
        %v2806 = vpop.f32.mrb[0].mxu0
        %v2807 = vadd.f32 %v2582, %v2806
        %v2808 = vpop.f32.mrb[0].mxu0
        %2809 = vmatprep.mubr.f32.mxu0 0.0
        %2810 = vmatmul.mubr.f32.gmra.mrb[0].mxu0 %v2624
        %v2811 = vpop.f32.mrb[0].mxu0
        %v2812 = vadd.f32 %v2582, %v2811
        %v2813 = vpop.f32.mrb[0].mxu0
        %2814 = vmatprep.mubr.f32.mxu0 0.0
        %2815 = vmatmul.mubr.f32.gmra.mrb[0].mxu0 %v2627
        %v2816 = vpop.f32.mrb[0].mxu0
        %v2817 = vadd.f32 %v2582, %v2816
        %v2818 = vpop.f32.mrb[0].mxu0
        %2819 = vmatprep.mubr.f32.mxu0 0.0
        %2820 = vmatmul.mubr.f32.gmra.mrb[0].mxu0 %v2630
        %v2821 = vpop.f32.mrb[0].mxu0
        %v2822 = vadd.f32 %v2582, %v2821
        %v2823 = vpop.f32.mrb[0].mxu0
        %2824 = vmatprep.mubr.f32.mxu0 0.0
        %2825 = vmatmul.mubr.f32.gmra.mrb[0].mxu0 %v2633
        %v2826 = vpop.f32.mrb[0].mxu0
        %v2827 = vadd.f32 %v2582, %v2826
        %v2828 = vpop.f32.mrb[0].mxu0
        %2829 = vmatprep.mubr.f32.mxu0 0.0
        %2830 = vmatmul.mubr.f32.gmra.mrb[0].mxu0 %v2636
        %v2831 = vpop.f32.mrb[0].mxu0
        %v2832 = vadd.f32 %v2582, %v2831
        %v2833 = vpop.f32.mrb[0].mxu0
        %2834 = vmatprep.mubr.f32.mxu0 0.0
        %2835 = vmatmul.mubr.f32.gmra.mrb[0].mxu0 %v2639
        %v2836 = vpop.f32.mrb[0].mxu0
        %v2837 = vadd.f32 %v2582, %v2836
        %v2838 = vpop.f32.mrb[0].mxu0
        %2839 = vmatprep.mubr.f32.mxu0 0.0
        %2840 = vmatmul.mubr.f32.gmra.mrb[0].mxu0 %v2642
        %v2841 = vpop.f32.mrb[0].mxu0
        %v2842 = vadd.f32 %v2582, %v2841
        %v2843 = vpop.f32.mrb[0].mxu0
        %2844 = vmatprep.mubr.f32.mxu0 0.0
        %2845 = vmatmul.mubr.f32.gmra.mrb[0].mxu0 %v2645
        %v2846 = vpop.f32.mrb[0].mxu0
        %v2847 = vadd.f32 %v2582, %v2846
        %v2848 = vpop.f32.mrb[0].mxu0
        %2849 = vmatprep.mubr.f32.mxu0 0.0
        %2850 = vmatmul.mubr.f32.gmra.mrb[0].mxu0 %v2648
        %v2851 = vpop.f32.mrb[0].mxu0
        %v2852 = vadd.f32 %v2582, %v2851
        %v2853 = vpop.f32.mrb[0].mxu0
        %2854 = vmatprep.mubr.f32.mxu0 0.0
        %2855 = vmatmul.mubr.f32.gmra.mrb[0].mxu0 %v2651
        %v2856 = vpop.f32.mrb[0].mxu0
        %v2857 = vadd.f32 %v2582, %v2856
        %v2858 = vpop.f32.mrb[0].mxu0
        %2859 = vmatprep.mubr.f32.mxu0 0.0
        %2860 = vmatmul.mubr.f32.gmra.mrb[0].mxu0 %v2654
        %v2861 = vpop.f32.mrb[0].mxu0
        %v2862 = vadd.f32 %v2582, %v2861
        %v2863 = vpop.f32.mrb[0].mxu0
        %2864 = vmatprep.mubr.f32.mxu0 0.0
        %2865 = vmatmul.mubr.f32.gmra.mrb[0].mxu0 %v2657
        %v2866 = vpop.f32.mrb[0].mxu0
        %v2867 = vadd.f32 %v2582, %v2866
        %v2868 = vpop.f32.mrb[0].mxu0
        %2869 = vmatprep.mubr.f32.mxu0 0.0
        %2870 = vmatmul.mubr.f32.gmra.mrb[0].mxu0 %v2660
        %v2871 = vpop.f32.mrb[0].mxu0
        %v2872 = vadd.f32 %v2582, %v2871
        %v2873 = vpop.f32.mrb[0].mxu0
        %2874 = vmatprep.mubr.f32.mxu0 0.0
        %2875 = vmatmul.mubr.f32.gmra.mrb[0].mxu0 %v2663
        %v2876 = vpop.f32.mrb[0].mxu0
        %v2877 = vadd.f32 %v2582, %v2876
        %v2878 = vpop.f32.mrb[0].mxu0
        %2879 = vmatprep.mubr.f32.mxu0 0.0
        %2880 = vmatmul.mubr.f32.gmra.mrb[0].mxu0 %v2666
        %v2881 = vpop.f32.mrb[0].mxu0
        %v2882 = vadd.f32 %v2582, %v2881
        %v2883 = vpop.f32.mrb[0].mxu0
        %2884 = vmatprep.mubr.f32.mxu0 0.0
        %2885 = vmatmul.mubr.f32.gmra.mrb[0].mxu0 %v2669
        %v2886 = vpop.f32.mrb[0].mxu0
        %v2887 = vadd.f32 %v2582, %v2886
        %v2888 = vpop.f32.mrb[0].mxu0
        %2889 = vmatprep.mubr.f32.mxu0 0.0
        %2890 = vmatmul.mubr.f32.gmra.mrb[0].mxu0 %v2672
        %v2891 = vpop.f32.mrb[0].mxu0
        %v2892 = vadd.f32 %v2582, %v2891
        %v2893 = vpop.f32.mrb[0].mxu0
        %2894 = vmatprep.mubr.f32.mxu0 0.0
        %2895 = vmatmul.mubr.f32.gmra.mrb[0].mxu0 %v2675
        %v2896 = vpop.f32.mrb[0].mxu0
        %v2897 = vadd.f32 %v2582, %v2896
        %v2898 = vpop.f32.mrb[0].mxu0
        %2899 = vmatprep.mubr.f32.mxu0 0.0
        %2900 = vmatmul.mubr.f32.gmra.mrb[0].mxu0 %v2678
        %v2901 = vpop.f32.mrb[0].mxu0
        %v2902 = vadd.f32 %v2582, %v2901
        %v2903 = vpop.f32.mrb[0].mxu0
        %2904 = vdwg.mxu0
        %2905 = vrot.lane.b32.xlu0 %v2541, 8
        %v2906 = vpop.permute.xlu0 %2905
        %2907 = vrot.lane.b32.xlu0 %v2542, 8
        %v2908 = vpop.permute.xlu0 %2907
        %2909 = vrot.lane.b32.xlu0 %v2543, 8
        %v2910 = vpop.permute.xlu0 %2909
        %2911 = vrot.lane.b32.xlu0 %v2544, 8
        %v2912 = vpop.permute.xlu0 %2911
        %2913 = vrot.lane.b32.xlu0 %v2545, 8
        %v2914 = vpop.permute.xlu0 %2913
        %2915 = vrot.lane.b32.xlu0 %v2546, 8
        %v2916 = vpop.permute.xlu0 %2915
        %2917 = vrot.lane.b32.xlu0 %v2547, 8
        %v2918 = vpop.permute.xlu0 %2917
        %2919 = vrot.lane.b32.xlu0 %v2548, 8
        %v2920 = vpop.permute.xlu0 %2919
        %2921 = vrot.lane.b32.xlu0 %v2549, 8
        %v2922 = vpop.permute.xlu0 %2921
        %2923 = vrot.lane.b32.xlu0 %v2550, 8
        %v2924 = vpop.permute.xlu0 %2923
        %2925 = vrot.lane.b32.xlu0 %v2551, 8
        %v2926 = vpop.permute.xlu0 %2925
        %2927 = vrot.lane.b32.xlu0 %v2552, 8
        %v2928 = vpop.permute.xlu0 %2927
        %2929 = vrot.lane.b32.xlu0 %v2553, 8
        %v2930 = vpop.permute.xlu0 %2929
        %2931 = vrot.lane.b32.xlu0 %v2554, 8
        %v2932 = vpop.permute.xlu0 %2931
        %2933 = vrot.lane.b32.xlu0 %v2555, 8
        %v2934 = vpop.permute.xlu0 %2933
        %2935 = vrot.lane.b32.xlu0 %v2556, 8
        %v2936 = vpop.permute.xlu0 %2935
        %2937 = vrot.lane.b32.xlu0 %v2557, 8
        %v2938 = vpop.permute.xlu0 %2937
        %2939 = vrot.lane.b32.xlu0 %v2558, 8
        %v2940 = vpop.permute.xlu0 %2939
        %2941 = vrot.lane.b32.xlu0 %v2559, 8
        %v2942 = vpop.permute.xlu0 %2941
        %2943 = vrot.lane.b32.xlu0 %v2560, 8
        %v2944 = vpop.permute.xlu0 %2943
        %2945 = vrot.lane.b32.xlu0 %v2561, 8
        %v2946 = vpop.permute.xlu0 %2945
        %2947 = vrot.lane.b32.xlu0 %v2562, 8
        %v2948 = vpop.permute.xlu0 %2947
        %2949 = vrot.lane.b32.xlu0 %v2563, 8
        %v2950 = vpop.permute.xlu0 %2949
        %2951 = vrot.lane.b32.xlu0 %v2564, 8
        %v2952 = vpop.permute.xlu0 %2951
        %2953 = vrot.lane.b32.xlu0 %v2565, 8
        %v2954 = vpop.permute.xlu0 %2953
        %2955 = vrot.lane.b32.xlu0 %v2566, 8
        %v2956 = vpop.permute.xlu0 %2955
        %2957 = vrot.lane.b32.xlu0 %v2567, 8
        %v2958 = vpop.permute.xlu0 %2957
        %2959 = vrot.lane.b32.xlu0 %v2568, 8
        %v2960 = vpop.permute.xlu0 %2959
        %2961 = vrot.lane.b32.xlu0 %v2569, 8
        %v2962 = vpop.permute.xlu0 %2961
        %2963 = vrot.lane.b32.xlu0 %v2570, 8
        %v2964 = vpop.permute.xlu0 %2963
        %2965 = vrot.lane.b32.xlu0 %v2571, 8
        %v2966 = vpop.permute.xlu0 %2965
        %2967 = vrot.lane.b32.xlu0 %v2572, 8
        %v2968 = vpop.permute.xlu0 %2967
        %vm3001 = vcmask 64512
        %v3002 = vsel %vm3001, %v2747, %v2906
        %v3003 = vsel %vm3001, %v2752, %v2908
        %v3004 = vsel %vm3001, %v2757, %v2910
        %v3005 = vsel %vm3001, %v2762, %v2912
        %v3006 = vsel %vm3001, %v2767, %v2914
        %v3007 = vsel %vm3001, %v2772, %v2916
        %v3008 = vsel %vm3001, %v2777, %v2918
        %v3009 = vsel %vm3001, %v2782, %v2920
        %v3010 = vsel %vm3001, %v2787, %v2922
        %v3011 = vsel %vm3001, %v2792, %v2924
        %v3012 = vsel %vm3001, %v2797, %v2926
        %v3013 = vsel %vm3001, %v2802, %v2928
        %v3014 = vsel %vm3001, %v2807, %v2930
        %v3015 = vsel %vm3001, %v2812, %v2932
        %v3016 = vsel %vm3001, %v2817, %v2934
        %v3017 = vsel %vm3001, %v2822, %v2936
        %v3018 = vsel %vm3001, %v2827, %v2938
        %v3019 = vsel %vm3001, %v2832, %v2940
        %v3020 = vsel %vm3001, %v2837, %v2942
        %v3021 = vsel %vm3001, %v2842, %v2944
        %v3022 = vsel %vm3001, %v2847, %v2946
        %v3023 = vsel %vm3001, %v2852, %v2948
        %v3024 = vsel %vm3001, %v2857, %v2950
        %v3025 = vsel %vm3001, %v2862, %v2952
        %v3026 = vsel %vm3001, %v2867, %v2954
        %v3027 = vsel %vm3001, %v2872, %v2956
        %v3028 = vsel %vm3001, %v2877, %v2958
        %v3029 = vsel %vm3001, %v2882, %v2960
        %v3030 = vsel %vm3001, %v2887, %v2962
        %v3031 = vsel %vm3001, %v2892, %v2964
        %v3032 = vsel %vm3001, %v2897, %v2966
        %v3033 = vsel %vm3001, %v2902, %v2968
        %vm3034 = vcmask 326656
        %v3035 = vsel %vm3034, %v3002, %v2413
        %v3036 = vsel %vm3034, %v3003, %v2414
        %v3037 = vsel %vm3034, %v3004, %v2415
        %v3038 = vsel %vm3034, %v3005, %v2416
        %v3039 = vsel %vm3034, %v3006, %v2417
        %v3040 = vsel %vm3034, %v3007, %v2418
        %v3041 = vsel %vm3034, %v3008, %v2419
        %v3042 = vsel %vm3034, %v3009, %v2420
        %v3043 = vsel %vm3034, %v3010, %v2421
        %v3044 = vsel %vm3034, %v3011, %v2422
        %v3045 = vsel %vm3034, %v3012, %v2423
        %v3046 = vsel %vm3034, %v3013, %v2424
        %v3047 = vsel %vm3034, %v3014, %v2425
        %v3048 = vsel %vm3034, %v3015, %v2426
        %v3049 = vsel %vm3034, %v3016, %v2427
        %v3050 = vsel %vm3034, %v3017, %v2428
        %v3051 = vsel %vm3034, %v3018, %v2429
        %v3052 = vsel %vm3034, %v3019, %v2430
        %v3053 = vsel %vm3034, %v3020, %v2431
        %v3054 = vsel %vm3034, %v3021, %v2432
        %v3055 = vsel %vm3034, %v3022, %v2433
        %v3056 = vsel %vm3034, %v3023, %v2434
        %v3057 = vsel %vm3034, %v3024, %v2435
        %v3058 = vsel %vm3034, %v3025, %v2436
        %v3059 = vsel %vm3034, %v3026, %v2437
        %v3060 = vsel %vm3034, %v3027, %v2438
        %v3061 = vsel %vm3034, %v3028, %v2439
        %v3062 = vsel %vm3034, %v3029, %v2440
        %v3063 = vsel %vm3034, %v3030, %v2441
        %v3064 = vsel %vm3034, %v3031, %v2442
        %v3065 = vsel %vm3034, %v3032, %v2443
        %v3066 = vsel %vm3034, %v3033, %v2444
        %vm3067 = vcmask 334848
        %v3068 = vsel %vm3067, %v3035, %v2445
        %v3069 = vsel %vm3067, %v3036, %v2446
        %v3070 = vsel %vm3067, %v3037, %v2447
        %v3071 = vsel %vm3067, %v3038, %v2448
        %v3072 = vsel %vm3067, %v3039, %v2449
        %v3073 = vsel %vm3067, %v3040, %v2450
        %v3074 = vsel %vm3067, %v3041, %v2451
        %v3075 = vsel %vm3067, %v3042, %v2452
        %v3076 = vsel %vm3067, %v3043, %v2453
        %v3077 = vsel %vm3067, %v3044, %v2454
        %v3078 = vsel %vm3067, %v3045, %v2455
        %v3079 = vsel %vm3067, %v3046, %v2456
        %v3080 = vsel %vm3067, %v3047, %v2457
        %v3081 = vsel %vm3067, %v3048, %v2458
        %v3082 = vsel %vm3067, %v3049, %v2459
        %v3083 = vsel %vm3067, %v3050, %v2460
        %v3084 = vsel %vm3067, %v3051, %v2461
        %v3085 = vsel %vm3067, %v3052, %v2462
        %v3086 = vsel %vm3067, %v3053, %v2463
        %v3087 = vsel %vm3067, %v3054, %v2464
        %v3088 = vsel %vm3067, %v3055, %v2465
        %v3089 = vsel %vm3067, %v3056, %v2466
        %v3090 = vsel %vm3067, %v3057, %v2467
        %v3091 = vsel %vm3067, %v3058, %v2468
        %v3092 = vsel %vm3067, %v3059, %v2469
        %v3093 = vsel %vm3067, %v3060, %v2470
        %v3094 = vsel %vm3067, %v3061, %v2471
        %v3095 = vsel %vm3067, %v3062, %v2472
        %v3096 = vsel %vm3067, %v3063, %v2473
        %v3097 = vsel %vm3067, %v3064, %v2474
        %v3098 = vsel %vm3067, %v3065, %v2475
        %v3099 = vsel %vm3067, %v3066, %v2476
        %vm3100 = vcmask 343040
        %v3101 = vsel %vm3100, %v3068, 0.0
        %v3102 = vsel %vm3100, %v3069, 0.0
        %v3103 = vsel %vm3100, %v3070, 0.0
        %v3104 = vsel %vm3100, %v3071, 0.0
        %v3105 = vsel %vm3100, %v3072, 0.0
        %v3106 = vsel %vm3100, %v3073, 0.0
        %v3107 = vsel %vm3100, %v3074, 0.0
        %v3108 = vsel %vm3100, %v3075, 0.0
        %v3109 = vsel %vm3100, %v3076, 0.0
        %v3110 = vsel %vm3100, %v3077, 0.0
        %v3111 = vsel %vm3100, %v3078, 0.0
        %v3112 = vsel %vm3100, %v3079, 0.0
        %v3113 = vsel %vm3100, %v3080, 0.0
        %v3114 = vsel %vm3100, %v3081, 0.0
        %v3115 = vsel %vm3100, %v3082, 0.0
        %v3116 = vsel %vm3100, %v3083, 0.0
        %v3117 = vsel %vm3100, %v3084, 0.0
        %v3118 = vsel %vm3100, %v3085, 0.0
        %v3119 = vsel %vm3100, %v3086, 0.0
        %v3120 = vsel %vm3100, %v3087, 0.0
        %v3121 = vsel %vm3100, %v3088, 0.0
        %v3122 = vsel %vm3100, %v3089, 0.0
        %v3123 = vsel %vm3100, %v3090, 0.0
        %v3124 = vsel %vm3100, %v3091, 0.0
        %v3125 = vsel %vm3100, %v3092, 0.0
        %v3126 = vsel %vm3100, %v3093, 0.0
        %v3127 = vsel %vm3100, %v3094, 0.0
        %v3128 = vsel %vm3100, %v3095, 0.0
        %v3129 = vsel %vm3100, %v3096, 0.0
        %v3130 = vsel %vm3100, %v3097, 0.0
        %v3131 = vsel %vm3100, %v3098, 0.0
        %v3132 = vsel %vm3100, %v3099, 0.0
        %3133 = vst [vmem:[%s396] sm:$0xff] %v3101
        %3134 = vst [vmem:[%s396 + $0x8] sm:$0xff] %v3102
        %3135 = vst [vmem:[%s396 + $0x10] sm:$0xff] %v3103
        %3136 = vst [vmem:[%s396 + $0x18] sm:$0xff] %v3104
        %3137 = vst [vmem:[%s396 + $0x20] sm:$0xff] %v3105
        %3138 = vst [vmem:[%s396 + $0x28] sm:$0xff] %v3106
        %3139 = vst [vmem:[%s396 + $0x30] sm:$0xff] %v3107
        %3140 = vst [vmem:[%s396 + $0x38] sm:$0xff] %v3108
        %3141 = vst [vmem:[%s396 + $0x40] sm:$0xff] %v3109
        %3142 = vst [vmem:[%s396 + $0x48] sm:$0xff] %v3110
        %3143 = vst [vmem:[%s396 + $0x50] sm:$0xff] %v3111
        %3144 = vst [vmem:[%s396 + $0x58] sm:$0xff] %v3112
        %3145 = vst [vmem:[%s396 + $0x60] sm:$0xff] %v3113
        %3146 = vst [vmem:[%s396 + $0x68] sm:$0xff] %v3114
        %3147 = vst [vmem:[%s396 + $0x70] sm:$0xff] %v3115
        %3148 = vst [vmem:[%s396 + $0x78] sm:$0xff] %v3116
        %3149 = vst [vmem:[%s396 + $0x80] sm:$0xff] %v3117
        %3150 = vst [vmem:[%s396 + $0x88] sm:$0xff] %v3118
        %3151 = vst [vmem:[%s396 + $0x90] sm:$0xff] %v3119
        %3152 = vst [vmem:[%s396 + $0x98] sm:$0xff] %v3120
        %3153 = vst [vmem:[%s396 + $0xa0] sm:$0xff] %v3121
        %3154 = vst [vmem:[%s396 + $0xa8] sm:$0xff] %v3122
        %3155 = vst [vmem:[%s396 + $0xb0] sm:$0xff] %v3123
        %3156 = vst [vmem:[%s396 + $0xb8] sm:$0xff] %v3124
        %3157 = vst [vmem:[%s396 + $0xc0] sm:$0xff] %v3125
        %3158 = vst [vmem:[%s396 + $0xc8] sm:$0xff] %v3126
        %3159 = vst [vmem:[%s396 + $0xd0] sm:$0xff] %v3127
        %3160 = vst [vmem:[%s396 + $0xd8] sm:$0xff] %v3128
        %3161 = vst [vmem:[%s396 + $0xe0] sm:$0xff] %v3129
        %3162 = vst [vmem:[%s396 + $0xe8] sm:$0xff] %v3130
        %3163 = vst [vmem:[%s396 + $0xf0] sm:$0xff] %v3131
        %3164 = vst [vmem:[%s396 + $0xf8] sm:$0xff] %v3132
        %s3165 = sand.u32 %s274, 1
        %s3166 = scalar_lea.sflag [#allocation3], %s3165
        %s3167 = sand.u32 %s274, 1
        %s3168 = smul.addr %s3167, 256
        %s3169 = scalar_lea.vmem [#allocation2], %s3168
        // Predicated region
        $region65: #{tpu_custom_call.1} parent=63 // pred_check
          %p3170 = pneg %p284
        $region66: #{tpu_custom_call.1} parent=63 // pred_check_branch
          %3172 = sbr.rel (%p3170) target = $region68
        $region67: #{tpu_custom_call.1} parent=63 // pred_region
          %s3173 = smul.u32 32, %s25
          %s3175 = ssub.s32 4096, 4096
          %3176 = vsyncadd %s3166, %s3175
          %s3177 = smul.addr %s3173, 128
          %s3178 = scalar_lea.hbm %s11, %s3177
          %s3179 = sshll.u32 %s3169, 4
          %s3180 = int_to_ptr.vmem [resolvable:$true] %s3179
          %3185 = dma.vmem_to_hbm [thread:$0]  %s3180, 4096, %s3178, %s3166, 128, 128, 8
        $region68: #{tpu_custom_call.1} parent=63 // pred_fallthru
          _
      $region64: #{tpu_custom_call.1} parent=5 // pred_fallthru
        _
      %p3186 = scmp.le.s32.totalorder 2, %s20
      // Predicated region
      $region69: #{tpu_custom_call.1} parent=5 // pred_check
        %p3187 = pneg %p3186
      $region70: #{tpu_custom_call.1} parent=5 // pred_check_branch
        %3189 = sbr.rel (%p3187) target = $region72
      $region71: #{tpu_custom_call.1} parent=5 // pred_region
        %s3190 = ssub.s32 %s20, 2
        // Predicated region
        $region73: #{tpu_custom_call.1} parent=71 // pred_check
          %p3191 = pneg %p290
        $region74: #{tpu_custom_call.1} parent=71 // pred_check_branch
          %3193 = sbr.rel (%p3191) target = $region76
        $region75: #{tpu_custom_call.1} parent=71 // pred_region
          %s3194 = sand.u32 %s275, 1
          %s3195 = scalar_lea.sflag [#allocation3], %s3194
          %s3196 = sand.u32 %s275, 1
          %s3197 = smul.addr %s3196, 256
          %s3198 = scalar_lea.vmem [#allocation2], %s3197
          %3199 = dma.done %s3195, 4096
        $region76: #{tpu_custom_call.1} parent=71 // pred_fallthru
          _
      $region72: #{tpu_custom_call.1} parent=5 // pred_fallthru
        _
    $region6: #{tpu_custom_call.1} parent=1 // loop_footer
      %s24 = sadd.s32 1, %s20
    $region7: #{tpu_custom_call.1} parent=1 // loop_footer_branch
      %19 = sbr.rel target = $region3
    $region8: #{tpu_custom_call.1} parent=1 // loop_exit
      _
    %3200 = vsyncpa [#allocation3], 1
    %s3201 = scalar_lea.sflag [#allocation3], 1
    %3202 = vsyncpa %s3201, 1

</llo_original>
